<compile_context>
chip_gen: v7x
topology: tpu7x:2x2x1
jax: 0.10.0
libtpu: 0.0.40
codegen_flags: <defaults>
</compile_context>

<pallas_src>
import functools
import math

import jax
import jax.numpy as jnp
from jax.experimental import pallas as pl
from jax.experimental.pallas import tpu as pltpu

_HIGHEST = jax.lax.Precision.HIGHEST
_GELU_C = math.sqrt(2.0 / math.pi)
_LN_EPS = 1e-6
_MASK_FILL = -9e15

# Matmul operand dtype used both by the kernels and by the pure-JAX reference so the
# self-check compares identical numerics (bf16 operands, f32 MXU accumulation).
_MM_DTYPE = jnp.bfloat16

_VMEM_LIMIT_BYTES = 64 * 1024 * 1024      # explicit scoped-VMEM budget (v5e/v6e/v7x safe)
_MOE_TILE_TARGET = 256                    # token tile target (v7x-safe; 512 OK on v5e/v6e)
_RESIDENT_WEIGHT_BYTES = 12 * 1024 * 1024 # keep stacked expert weights VMEM-resident below this


def _round_up(a, b):
    return (a + b - 1) // b * b


# ---------------------------------------------------------------------------
# Kernel 1: fused multi-head attention + residual + LayerNorm (one batch / step)
# ---------------------------------------------------------------------------
def _attention_kernel(*refs, heads, dk, has_bias, with_scores):
    i = 0
    x_ref = refs[i]; i += 1
    mask_ref = refs[i]; i += 1
    bias_ref = None
    if has_bias:
        bias_ref = refs[i]; i += 1
    wq_ref, wk_ref, wv_ref, g_ref, b_ref = refs[i:i + 5]; i += 5
    scores_ref = None
    if with_scores:
        scores_ref = refs[i]; i += 1
    out_ref = refs[i]
    acc_ref = refs[i + 1]                     # VMEM [S, D] f32 head-output slab

    x = x_ref[0]                              # [S, D] f32
    xb = x.astype(_MM_DTYPE)                  # bf16 operands for all MXU matmuls
    m = mask_ref[0]                           # [1, S]  (1.0 = valid key)
    scale = 1.0 / math.sqrt(dk)

    for h in range(heads):                    # static -> unrolled
        # head-major weights: wq_ref[h] is [D, dk]; no activation lane slicing.
        qh = jnp.dot(xb, wq_ref[h], preferred_element_type=jnp.float32)   # [S, dk]
        kh = jnp.dot(xb, wk_ref[h], preferred_element_type=jnp.float32)
        vh = jnp.dot(xb, wv_ref[h], preferred_element_type=jnp.float32)

        sc = jax.lax.dot_general(qh.astype(_MM_DTYPE), kh.astype(_MM_DTYPE),
                                 (((1,), (1,)), ((), ())),
                                 preferred_element_type=jnp.float32) * scale
        if has_bias:
            sc = sc + bias_ref[0, h].astype(jnp.float32)
        sc = jnp.where(m > 0.0, sc, _MASK_FILL)

        sc_max = jnp.max(sc, axis=-1, keepdims=True)
        p = jnp.exp(sc - sc_max)
        # Exact division (not pl.reciprocal(approx=True)) so attention probs match the
        # f32 reference bit-closely and the downstream MoE routing stays identical.
        p = p / jnp.sum(p, axis=-1, keepdims=True)
        # TODO(synk): attention-prob dropout is treated as inference-mode identity.
        if with_scores:
            scores_ref[0, h] = p

        # Per-head output written straight into the resident [S, D] slab (static
        # column slice) instead of a lane-axis concatenate.
        acc_ref[:, h * dk:(h + 1) * dk] = jnp.dot(
            p.astype(_MM_DTYPE), vh.astype(_MM_DTYPE),
            preferred_element_type=jnp.float32)

    attn = acc_ref[...]
    z = x + attn
    mean = jnp.mean(z, axis=-1, keepdims=True)
    var = jnp.mean(jnp.square(z - mean), axis=-1, keepdims=True)
    zn = (z - mean) * jax.lax.rsqrt(var + _LN_EPS)
    out_ref[0] = (zn * g_ref[...] + b_ref[...]).astype(out_ref.dtype)


def attention_layer(x, mask, attn_bias, p, heads, return_scores=True):
    b, s, d = x.shape
    dk = d // heads
    mask3 = mask.reshape(b, 1, s).astype(jnp.float32)
    has_bias = attn_bias is not None

    # nn.Linear weight is [out, in]; make head-major [H, D(in), dk] bf16 resident blocks.
    def head_major(w):
        return jnp.transpose(w.T.reshape(d, heads, dk), (1, 0, 2)).astype(_MM_DTYPE)

    wq3, wk3, wv3 = head_major(p["wq"]), head_major(p["wk"]), head_major(p["wv"])

    inputs = [x, mask3]
    in_specs = [pl.BlockSpec((1, s, d), lambda i: (i, 0, 0)),          # x
                pl.BlockSpec((1, 1, s), lambda i: (i, 0, 0))]          # key mask
    if has_bias:
        # bias streamed as bf16 (halves HBM traffic); no dense zero bias is ever built.
        inputs.append(attn_bias.astype(_MM_DTYPE))
        in_specs.append(pl.BlockSpec((1, heads, s, s), lambda i: (i, 0, 0, 0)))
    inputs += [wq3, wk3, wv3, p["ln1_g"], p["ln1_b"]]
    in_specs += [pl.BlockSpec((heads, d, dk), lambda i: (0, 0, 0))] * 3  # resident weights
    in_specs += [pl.BlockSpec((1, d), lambda i: (0, 0))] * 2             # LN gamma/beta

    out_shapes, out_specs = [], []
    if return_scores:
        out_shapes.append(jax.ShapeDtypeStruct((b, heads, s, s), jnp.float32))
        out_specs.append(pl.BlockSpec((1, heads, s, s), lambda i: (i, 0, 0, 0)))
    out_shapes.append(jax.ShapeDtypeStruct((b, s, d), jnp.float32))
    out_specs.append(pl.BlockSpec((1, s, d), lambda i: (i, 0, 0)))

    kernel = functools.partial(_attention_kernel, heads=heads, dk=dk,
                               has_bias=has_bias, with_scores=return_scores)
    # TODO(synk): for large S on v7x (64 MiB VMEM), tile the query axis
    # (grid=(B, S//tq), tq≈128-256) and stream bias/scores per q-tile.
    results = pl.pallas_call(
        kernel,
        out_shape=tuple(out_shapes),
        grid=(b,),
        in_specs=in_specs,
        out_specs=tuple(out_specs),
        scratch_shapes=[pltpu.VMEM((s, d), jnp.float32)],
        compiler_params=pltpu.CompilerParams(
            dimension_semantics=("parallel",),
            vmem_limit_bytes=_VMEM_LIMIT_BYTES),
    )(*inputs)

    if return_scores:
        return results[0], results[1]
    return None, results[0]


# ---------------------------------------------------------------------------
# Kernel 2: MoE expert combine with per-tile expert skipping
#   grid = (token_tiles, experts); expert axis is the reduction ("arbitrary") axis.
# ---------------------------------------------------------------------------
def _moe_kernel(flags_ref, x_ref, we_ref, w1_ref, b1_ref, w2_ref, b2_ref,
                g_ref, beta_ref, out_ref, *, resident, num_experts):
    ni = pl.program_id(0)
    ei = pl.program_id(1)

    @pl.when(ei == 0)
    def _init():
        out_ref[...] = jnp.zeros_like(out_ref)

    # Skip experts that received no token in this tile (exact: their combine
    # weights are identically zero).  flags live in SMEM via scalar prefetch.
    @pl.when(flags_ref[ni * num_experts + ei] > 0)
    def _expert():
        widx = ei if resident else 0
        x = x_ref[...]                                         # [T, D] f32
        xb = x.astype(_MM_DTYPE)
        h = jnp.dot(xb, w1_ref[widx],
                    preferred_element_type=jnp.float32) + b1_ref[ei]
        h = 0.5 * h * (1.0 + jnp.tanh(_GELU_C * (h + 0.044715 * h * h * h)))
        y = jnp.dot(h.astype(_MM_DTYPE), w2_ref[widx],
                    preferred_element_type=jnp.float32) + b2_ref[ei]
        # TODO(synk): FeedForward dropout is treated as inference-mode identity.
        z = x + y
        mean = jnp.mean(z, axis=-1, keepdims=True)
        var = jnp.mean(jnp.square(z - mean), axis=-1, keepdims=True)
        y_e = (z - mean) * jax.lax.rsqrt(var + _LN_EPS) * g_ref[ei] + beta_ref[ei]

        # per-token combine weight for this expert, streamed as a [T, 1] block
        out_ref[...] += we_ref[0] * y_e


def moe_layer(x, p, k_top):
    b, s, d = x.shape
    n = b * s
    xf = x.reshape(n, d)
    e_num = p["wg"].shape[0]
    dff = p["w1"].shape[1]

    # ---- top-k gate computed once, at f32/HIGHEST (routing parity with reference) ----
    gs = jnp.dot(xf, p["wg"].T, precision=_HIGHEST)            # [N, E]
    vals, idx = jax.lax.top_k(gs, k_top)
    wk = jax.nn.softmax(vals, axis=-1)                          # [N, K]
    cw = jnp.sum(jax.nn.one_hot(idx, e_num, dtype=jnp.float32) * wk[..., None], axis=1)

    # ---- token tiling (pad instead of relying on divisors; tile_n is always a mult. of 8)
    tile_n = min(_MOE_TILE_TARGET, _round_up(n, 8))
    n_pad = _round_up(n, tile_n)
    if n_pad != n:
        xf = jnp.pad(xf, ((0, n_pad - n), (0, 0)))
        cw = jnp.pad(cw, ((0, n_pad - n), (0, 0)))
    num_tiles = n_pad // tile_n

    flags = (cw.reshape(num_tiles, tile_n, e_num) > 0).any(axis=1)
    flags = flags.astype(jnp.int32).reshape(-1)                 # 1-D SMEM-friendly
    cw_e = jnp.transpose(cw).reshape(e_num, n_pad, 1)           # expert-major weights

    w1T = jnp.transpose(p["w1"], (0, 2, 1)).astype(_MM_DTYPE)   # [E, D, 2D] bf16
    w2T = jnp.transpose(p["w2"], (0, 2, 1)).astype(_MM_DTYPE)   # [E, 2D, D] bf16
    resident = (w1T.size + w2T.size) * 2 <= _RESIDENT_WEIGHT_BYTES

    if resident:   # whole stacked expert weights stay in VMEM; indexed by expert in-kernel
        w1_spec = pl.BlockSpec((e_num, d, dff), lambda ni, ei, f: (0, 0, 0))
        w2_spec = pl.BlockSpec((e_num, dff, d), lambda ni, ei, f: (0, 0, 0))
    else:          # stream one expert's weights per step (double-buffered by Pallas)
        w1_spec = pl.BlockSpec((1, d, dff), lambda ni, ei, f: (ei, 0, 0))
        w2_spec = pl.BlockSpec((1, dff, d), lambda ni, ei, f: (ei, 0, 0))

    kernel = functools.partial(_moe_kernel, resident=resident, num_experts=e_num)
    out = pl.pallas_call(
        kernel,
        out_shape=jax.ShapeDtypeStruct((n_pad, d), jnp.float32),
        grid_spec=pltpu.PrefetchScalarGridSpec(
            num_scalar_prefetch=1,
            grid=(num_tiles, e_num),
            in_specs=[
                pl.BlockSpec((tile_n, d), lambda ni, ei, f: (ni, 0)),      # x tile
                pl.BlockSpec((1, tile_n, 1), lambda ni, ei, f: (ei, ni, 0)),  # combine w
                w1_spec,
                pl.BlockSpec((e_num, 1, dff), lambda ni, ei, f: (0, 0, 0)),   # b1 (resident)
                w2_spec,
                pl.BlockSpec((e_num, 1, d), lambda ni, ei, f: (0, 0, 0)),     # b2
                pl.BlockSpec((e_num, 1, d), lambda ni, ei, f: (0, 0, 0)),     # LN gamma
                pl.BlockSpec((e_num, 1, d), lambda ni, ei, f: (0, 0, 0)),     # LN beta
            ],
            out_specs=pl.BlockSpec((tile_n, d), lambda ni, ei, f: (ni, 0)),
        ),
        compiler_params=pltpu.CompilerParams(
            dimension_semantics=("parallel", "arbitrary"),
            vmem_limit_bytes=_VMEM_LIMIT_BYTES),
    )(flags, xf, cw_e, w1T, p["b1"], w2T, p["b2"], p["ln2_g"], p["ln2_b"])
    return out[:n].reshape(b, s, d)


# ---------------------------------------------------------------------------
# Full module forward (stack of layers)
# ---------------------------------------------------------------------------
def global_reactivity_attention_moe(x, mask, attn_bias, params, heads,
                                    num_experts_per_tok, return_scores=True):
    scores_list = []
    for layer_p in params:
        score, x = attention_layer(x, mask, attn_bias, layer_p, heads, return_scores)
        x = moe_layer(x, layer_p, num_experts_per_tok)
        scores_list.append(score)
    return scores_list, x


# ---------------------------------------------------------------------------
# Parameter init (deterministic, mimicking the PyTorch module's inits)
# ---------------------------------------------------------------------------
def _xavier(key, shape):
    fan_out, fan_in = shape
    bound = math.sqrt(6.0 / (fan_in + fan_out))
    return jax.random.uniform(key, shape, jnp.float32, -bound, bound)


def init_params(key, d_model, n_layers, num_experts):
    dff = d_model * 2
    params = []
    for _ in range(n_layers):
        key, kq, kk, kv, kg, k1, kb1, k2, kb2 = jax.random.split(key, 9)
        b1_bound = 1.0 / math.sqrt(d_model)
        b2_bound = 1.0 / math.sqrt(dff)
        params.append(dict(
            wq=_xavier(kq, (d_model, d_model)),
            wk=_xavier(kk, (d_model, d_model)),
            wv=_xavier(kv, (d_model, d_model)),
            ln1_g=jnp.ones((1, d_model), jnp.float32),
            ln1_b=jnp.zeros((1, d_model), jnp.float32),
            wg=_xavier(kg, (num_experts, d_model)),
            w1=jax.random.uniform(k1, (num_experts, dff, d_model), jnp.float32,
                                  -b1_bound, b1_bound),
            b1=jax.random.uniform(kb1, (num_experts, 1, dff), jnp.float32,
                                  -b1_bound, b1_bound),
            w2=jax.random.uniform(k2, (num_experts, d_model, dff), jnp.float32,
                                  -b2_bound, b2_bound),
            b2=jax.random.uniform(kb2, (num_experts, 1, d_model), jnp.float32,
                                  -b2_bound, b2_bound),
            ln2_g=jnp.ones((num_experts, 1, d_model), jnp.float32),
            ln2_b=jnp.zeros((num_experts, 1, d_model), jnp.float32),
        ))
    return params


# ---------------------------------------------------------------------------
# Pure-JAX reference.  Same math as the PyTorch forward (dropout = identity) using
# the same matmul precision policy as the kernels (bf16 operands, f32 accumulation)
# so the comparison isolates kernel correctness; the gate stays f32/HIGHEST.
# ---------------------------------------------------------------------------
def _layernorm(z, g, b):
    mean = jnp.mean(z, axis=-1, keepdims=True)
    var = jnp.mean(jnp.square(z - mean), axis=-1, keepdims=True)
    return (z - mean) * jax.lax.rsqrt(var + _LN_EPS) * g + b


def _mmf(a, bm):
    return jnp.dot(a.astype(_MM_DTYPE), bm.astype(_MM_DTYPE),
                   preferred_element_type=jnp.float32)


def reference_forward(x, mask, attn_bias, params, heads, k_top):
    scores_list = []
    for p in params:
        b, s, d = x.shape
        dk = d // heads
        q, k, v = _mmf(x, p["wq"].T), _mmf(x, p["wk"].T), _mmf(x, p["wv"].T)
        split = lambda t: t.reshape(b, s, heads, dk).transpose(0, 2, 1, 3)
        qh, kh, vh = split(q), split(k), split(v)
        sc = jnp.einsum("bhid,bhjd->bhij", qh.astype(_MM_DTYPE), kh.astype(_MM_DTYPE),
                        preferred_element_type=jnp.float32) * (1.0 / math.sqrt(dk))
        if attn_bias is not None:
            sc = sc + attn_bias.astype(_MM_DTYPE).astype(jnp.float32)
        m = mask.reshape(b, 1, 1, s)
        sc = jnp.where(m > 0, sc, _MASK_FILL)
        sc_max = jnp.max(sc, axis=-1, keepdims=True)
        pexp = jnp.exp(sc - sc_max)
        probs = pexp / jnp.sum(pexp, axis=-1, keepdims=True)
        o = jnp.einsum("bhij,bhjd->bhid", probs.astype(_MM_DTYPE), vh.astype(_MM_DTYPE),
                       preferred_element_type=jnp.float32)
        o = o.transpose(0, 2, 1, 3).reshape(b, s, d)
        x = _layernorm(x + o, p["ln1_g"][0], p["ln1_b"][0])
        scores_list.append(probs)

        xf = x.reshape(-1, d)
        gs = jnp.dot(xf, p["wg"].T, precision=_HIGHEST)
        vals, idx = jax.lax.top_k(gs, k_top)
        w = jax.nn.softmax(vals, axis=-1)
        y = jnp.zeros_like(xf)
        for ei in range(p["wg"].shape[0]):
            h = _mmf(xf, p["w1"][ei].T) + p["b1"][ei]
            h = 0.5 * h * (1.0 + jnp.tanh(_GELU_C * (h + 0.044715 * h ** 3)))
            fe = _mmf(h, p["w2"][ei].T) + p["b2"][ei]
            fe = _layernorm(xf + fe, p["ln2_g"][ei], p["ln2_b"][ei])
            sel = jnp.sum(jnp.where(idx == ei, w, 0.0), axis=-1, keepdims=True)
            y = y + sel * fe
        x = y.reshape(b, s, d)
    return scores_list, x


if __name__ == "__main__":
    B, S, D, H = 2, 8, 32, 4          # batch, seq, d_model, heads
    E, K = 8, 2                        # num_experts, num_experts_per_tok
    N_LAYERS = 2

    key = jax.random.PRNGKey(0)
    kx, kb, kp = jax.random.split(key, 3)
    x = jax.random.normal(kx, (B, S, D), jnp.float32)
    mask = jnp.ones((B, S), jnp.float32).at[1, -2:].set(0.0)   # mask last 2 keys of sample 1
    attn_bias = 0.1 * jax.random.normal(kb, (B, H, S, S), jnp.float32)
    params = init_params(kp, D, N_LAYERS, E)

    scores_list, out = global_reactivity_attention_moe(x, mask, attn_bias, params, H, K)
    out = jax.block_until_ready(out)
    ref_scores, ref_out = reference_forward(x, mask, attn_bias, params, H, K)

    assert out.shape == (B, S, D)
    assert len(scores_list) == N_LAYERS
    for s_k, s_r in zip(scores_list, ref_scores):
        assert s_k.shape == (B, H, S, S)
        assert jnp.allclose(s_k, s_r, atol=2e-3, rtol=2e-3)
    assert jnp.allclose(out, ref_out, atol=2e-3, rtol=2e-3)

    # Also exercise the fast path: no attention bias and no score writeback.
    _, out_nb = global_reactivity_attention_moe(x, mask, None, params, H, K,
                                                return_scores=False)
    out_nb = jax.block_until_ready(out_nb)
    _, ref_nb = reference_forward(x, mask, None, params, H, K)
    assert jnp.allclose(out_nb, ref_nb, atol=2e-3, rtol=2e-3)

    print("KERNEL_OK")
</pallas_src>

<mosaic_0001>
module attributes {stable_mosaic.version = 11 : i64} {
  func.func @_attention_kernel(%arg0: i32, %arg1: memref<1x8x32xf32, #tpu.memory_space<vmem>>, %arg2: memref<1x1x8xf32, #tpu.memory_space<vmem>>, %arg3: memref<1x4x8x8xbf16, #tpu.memory_space<vmem>>, %arg4: memref<4x32x8xbf16, #tpu.memory_space<vmem>>, %arg5: memref<4x32x8xbf16, #tpu.memory_space<vmem>>, %arg6: memref<4x32x8xbf16, #tpu.memory_space<vmem>>, %arg7: memref<1x32xf32, #tpu.memory_space<vmem>>, %arg8: memref<1x32xf32, #tpu.memory_space<vmem>>, %arg9: memref<1x4x8x8xf32, #tpu.memory_space<vmem>>, %arg10: memref<1x8x32xf32, #tpu.memory_space<vmem>>, %arg11: memref<8x32xf32, #tpu.memory_space<vmem>>) attributes {dimension_semantics = [#tpu.dimension_semantics<parallel>], iteration_bounds = array<i64: 2>, scalar_prefetch = 0 : i64, scratch_operands = 1 : i64, tpu.core_type = #tpu.core_type<tc>, window_params = [{transform_indices = @transform_0, window_bounds = array<i64: 1, 8, 32>}, {transform_indices = @transform_1, window_bounds = array<i64: 1, 1, 8>}, {transform_indices = @transform_2, window_bounds = array<i64: 1, 4, 8, 8>}, {pipeline_mode = #tpu.pipeline_mode<synchronous>, transform_indices = @transform_3, window_bounds = array<i64: 4, 32, 8>}, {pipeline_mode = #tpu.pipeline_mode<synchronous>, transform_indices = @transform_4, window_bounds = array<i64: 4, 32, 8>}, {pipeline_mode = #tpu.pipeline_mode<synchronous>, transform_indices = @transform_5, window_bounds = array<i64: 4, 32, 8>}, {pipeline_mode = #tpu.pipeline_mode<synchronous>, transform_indices = @transform_6, window_bounds = array<i64: 1, 32>}, {pipeline_mode = #tpu.pipeline_mode<synchronous>, transform_indices = @transform_7, window_bounds = array<i64: 1, 32>}, {transform_indices = @transform_8, window_bounds = array<i64: 1, 4, 8, 8>}, {transform_indices = @transform_9, window_bounds = array<i64: 1, 8, 32>}]} {
    %c0 = arith.constant 0 : index
    %c0_0 = arith.constant 0 : index
    %c0_1 = arith.constant 0 : index
    %0 = vector.load %arg1[%c0, %c0_0, %c0_1] : memref<1x8x32xf32, #tpu.memory_space<vmem>>, vector<1x8x32xf32>
    %1 = vector.shape_cast %0 : vector<1x8x32xf32> to vector<8x32xf32>
    %2 = arith.truncf %1 : vector<8x32xf32> to vector<8x32xbf16>
    %c0_2 = arith.constant 0 : index
    %c0_3 = arith.constant 0 : index
    %c0_4 = arith.constant 0 : index
    %3 = vector.load %arg2[%c0_2, %c0_3, %c0_4] : memref<1x1x8xf32, #tpu.memory_space<vmem>>, vector<1x1x8xf32>
    %4 = vector.shape_cast %3 : vector<1x1x8xf32> to vector<1x8xf32>
    %c0_5 = arith.constant 0 : index
    %c0_6 = arith.constant 0 : index
    %c0_7 = arith.constant 0 : index
    %5 = vector.load %arg4[%c0_5, %c0_6, %c0_7] : memref<4x32x8xbf16, #tpu.memory_space<vmem>>, vector<1x32x8xbf16>
    %6 = vector.shape_cast %5 : vector<1x32x8xbf16> to vector<32x8xbf16>
    %cst = arith.constant dense<0.000000e+00> : vector<8x8xf32>
    %7 = tpu.matmul %2, %6, %cst {dimension_numbers = #tpu.dot_dimension_numbers<[1], [0], [0], [1], [0, 0, 1, 1], [], []>} : vector<8x32xbf16>, vector<32x8xbf16>, vector<8x8xf32> -> vector<8x8xf32>
    %c0_8 = arith.constant 0 : index
    %c0_9 = arith.constant 0 : index
    %c0_10 = arith.constant 0 : index
    %8 = vector.load %arg5[%c0_8, %c0_9, %c0_10] : memref<4x32x8xbf16, #tpu.memory_space<vmem>>, vector<1x32x8xbf16>
    %9 = vector.shape_cast %8 : vector<1x32x8xbf16> to vector<32x8xbf16>
    %cst_11 = arith.constant dense<0.000000e+00> : vector<8x8xf32>
    %10 = tpu.matmul %2, %9, %cst_11 {dimension_numbers = #tpu.dot_dimension_numbers<[1], [0], [0], [1], [0, 0, 1, 1], [], []>} : vector<8x32xbf16>, vector<32x8xbf16>, vector<8x8xf32> -> vector<8x8xf32>
    %c0_12 = arith.constant 0 : index
    %c0_13 = arith.constant 0 : index
    %c0_14 = arith.constant 0 : index
    %11 = vector.load %arg6[%c0_12, %c0_13, %c0_14] : memref<4x32x8xbf16, #tpu.memory_space<vmem>>, vector<1x32x8xbf16>
    %12 = vector.shape_cast %11 : vector<1x32x8xbf16> to vector<32x8xbf16>
    %cst_15 = arith.constant dense<0.000000e+00> : vector<8x8xf32>
    %13 = tpu.matmul %2, %12, %cst_15 {dimension_numbers = #tpu.dot_dimension_numbers<[1], [0], [0], [1], [0, 0, 1, 1], [], []>} : vector<8x32xbf16>, vector<32x8xbf16>, vector<8x8xf32> -> vector<8x8xf32>
    %14 = arith.truncf %7 : vector<8x8xf32> to vector<8x8xbf16>
    %15 = arith.truncf %10 : vector<8x8xf32> to vector<8x8xbf16>
    %cst_16 = arith.constant dense<0.000000e+00> : vector<8x8xf32>
    %16 = tpu.matmul %14, %15, %cst_16 {dimension_numbers = #tpu.dot_dimension_numbers<[1], [1], [0], [0], [0, 0, 1, 0], [], []>} : vector<8x8xbf16>, vector<8x8xbf16>, vector<8x8xf32> -> vector<8x8xf32>
    %cst_17 = arith.constant 0.353553385 : f32
    %17 = vector.broadcast %cst_17 : f32 to vector<8x8xf32>
    %18 = arith.mulf %16, %17 : vector<8x8xf32>
    %c0_18 = arith.constant 0 : index
    %c0_19 = arith.constant 0 : index
    %c0_20 = arith.constant 0 : index
    %c0_21 = arith.constant 0 : index
    %19 = vector.load %arg3[%c0_18, %c0_19, %c0_20, %c0_21] : memref<1x4x8x8xbf16, #tpu.memory_space<vmem>>, vector<1x1x8x8xbf16>
    %20 = vector.shape_cast %19 : vector<1x1x8x8xbf16> to vector<8x8xbf16>
    %21 = arith.extf %20 : vector<8x8xbf16> to vector<8x8xf32>
    %22 = arith.addf %18, %21 : vector<8x8xf32>
    %cst_22 = arith.constant 0.000000e+00 : f32
    %23 = vector.broadcast %cst_22 : f32 to vector<1x8xf32>
    %24 = arith.cmpf ogt, %4, %23 : vector<1x8xf32>
    %cst_23 = arith.constant -9.000000e+15 : f32
    %25 = vector.shape_cast %24 : vector<1x8xi1> to vector<1x8xi1>
    %26 = vector.broadcast %25 : vector<1x8xi1> to vector<8x8xi1>
    %27 = vector.broadcast %cst_23 : f32 to vector<8x8xf32>
    %28 = arith.select %26, %22, %27 : vector<8x8xi1>, vector<8x8xf32>
    %cst_24 = arith.constant dense<0xFF800000> : vector<8xf32>
    %29 = vector.multi_reduction <maximumf>, %28, %cst_24 [1] : vector<8x8xf32> to vector<8xf32>
    %30 = vector.shape_cast %29 : vector<8xf32> to vector<8x1xf32>
    %31 = vector.broadcast %30 : vector<8x1xf32> to vector<8x8xf32>
    %32 = arith.subf %28, %31 : vector<8x8xf32>
    %33 = math.exp %32 : vector<8x8xf32>
    %cst_25 = arith.constant dense<0.000000e+00> : vector<8xf32>
    %34 = vector.multi_reduction <add>, %33, %cst_25 [1] : vector<8x8xf32> to vector<8xf32>
    %35 = vector.shape_cast %34 : vector<8xf32> to vector<8x1xf32>
    %36 = vector.broadcast %35 : vector<8x1xf32> to vector<8x8xf32>
    %37 = arith.divf %33, %36 : vector<8x8xf32>
    %c0_26 = arith.constant 0 : index
    %c0_27 = arith.constant 0 : index
    %c0_28 = arith.constant 0 : index
    %c0_29 = arith.constant 0 : index
    %38 = vector.load %arg9[%c0_26, %c0_27, %c0_28, %c0_29] : memref<1x4x8x8xf32, #tpu.memory_space<vmem>>, vector<1x1x8x8xf32>
    %39 = vector.shape_cast %38 : vector<1x1x8x8xf32> to vector<8x8xf32>
    %40 = vector.shape_cast %37 : vector<8x8xf32> to vector<1x1x8x8xf32>
    tpu.vector_store %arg9[%c0_26, %c0_27, %c0_28, %c0_29], %40 {strides = array<i32>} : memref<1x4x8x8xf32, #tpu.memory_space<vmem>>, vector<1x1x8x8xf32>,
    %41 = arith.truncf %37 : vector<8x8xf32> to vector<8x8xbf16>
    %42 = arith.truncf %13 : vector<8x8xf32> to vector<8x8xbf16>
    %cst_30 = arith.constant dense<0.000000e+00> : vector<8x8xf32>
    %43 = tpu.matmul %41, %42, %cst_30 {dimension_numbers = #tpu.dot_dimension_numbers<[1], [0], [0], [1], [0, 0, 1, 1], [], []>} : vector<8x8xbf16>, vector<8x8xbf16>, vector<8x8xf32> -> vector<8x8xf32>
    %c0_31 = arith.constant 0 : index
    %c0_32 = arith.constant 0 : index
    %44 = vector.load %arg11[%c0_31, %c0_32] : memref<8x32xf32, #tpu.memory_space<vmem>>, vector<8x8xf32>
    tpu.vector_store %arg11[%c0_31, %c0_32], %43 {strides = array<i32>} : memref<8x32xf32, #tpu.memory_space<vmem>>, vector<8x8xf32>,
    %c1 = arith.constant 1 : index
    %c0_33 = arith.constant 0 : index
    %c0_34 = arith.constant 0 : index
    %45 = vector.load %arg4[%c1, %c0_33, %c0_34] : memref<4x32x8xbf16, #tpu.memory_space<vmem>>, vector<1x32x8xbf16>
    %46 = vector.shape_cast %45 : vector<1x32x8xbf16> to vector<32x8xbf16>
    %cst_35 = arith.constant dense<0.000000e+00> : vector<8x8xf32>
    %47 = tpu.matmul %2, %46, %cst_35 {dimension_numbers = #tpu.dot_dimension_numbers<[1], [0], [0], [1], [0, 0, 1, 1], [], []>} : vector<8x32xbf16>, vector<32x8xbf16>, vector<8x8xf32> -> vector<8x8xf32>
    %c1_36 = arith.constant 1 : index
    %c0_37 = arith.constant 0 : index
    %c0_38 = arith.constant 0 : index
    %48 = vector.load %arg5[%c1_36, %c0_37, %c0_38] : memref<4x32x8xbf16, #tpu.memory_space<vmem>>, vector<1x32x8xbf16>
    %49 = vector.shape_cast %48 : vector<1x32x8xbf16> to vector<32x8xbf16>
    %cst_39 = arith.constant dense<0.000000e+00> : vector<8x8xf32>
    %50 = tpu.matmul %2, %49, %cst_39 {dimension_numbers = #tpu.dot_dimension_numbers<[1], [0], [0], [1], [0, 0, 1, 1], [], []>} : vector<8x32xbf16>, vector<32x8xbf16>, vector<8x8xf32> -> vector<8x8xf32>
    %c1_40 = arith.constant 1 : index
    %c0_41 = arith.constant 0 : index
    %c0_42 = arith.constant 0 : index
    %51 = vector.load %arg6[%c1_40, %c0_41, %c0_42] : memref<4x32x8xbf16, #tpu.memory_space<vmem>>, vector<1x32x8xbf16>
    %52 = vector.shape_cast %51 : vector<1x32x8xbf16> to vector<32x8xbf16>
    %cst_43 = arith.constant dense<0.000000e+00> : vector<8x8xf32>
    %53 = tpu.matmul %2, %52, %cst_43 {dimension_numbers = #tpu.dot_dimension_numbers<[1], [0], [0], [1], [0, 0, 1, 1], [], []>} : vector<8x32xbf16>, vector<32x8xbf16>, vector<8x8xf32> -> vector<8x8xf32>
    %54 = arith.truncf %47 : vector<8x8xf32> to vector<8x8xbf16>
    %55 = arith.truncf %50 : vector<8x8xf32> to vector<8x8xbf16>
    %cst_44 = arith.constant dense<0.000000e+00> : vector<8x8xf32>
    %56 = tpu.matmul %54, %55, %cst_44 {dimension_numbers = #tpu.dot_dimension_numbers<[1], [1], [0], [0], [0, 0, 1, 0], [], []>} : vector<8x8xbf16>, vector<8x8xbf16>, vector<8x8xf32> -> vector<8x8xf32>
    %cst_45 = arith.constant 0.353553385 : f32
    %57 = vector.broadcast %cst_45 : f32 to vector<8x8xf32>
    %58 = arith.mulf %56, %57 : vector<8x8xf32>
    %c0_46 = arith.constant 0 : index
    %c1_47 = arith.constant 1 : index
    %c0_48 = arith.constant 0 : index
    %c0_49 = arith.constant 0 : index
    %59 = vector.load %arg3[%c0_46, %c1_47, %c0_48, %c0_49] : memref<1x4x8x8xbf16, #tpu.memory_space<vmem>>, vector<1x1x8x8xbf16>
    %60 = vector.shape_cast %59 : vector<1x1x8x8xbf16> to vector<8x8xbf16>
    %61 = arith.extf %60 : vector<8x8xbf16> to vector<8x8xf32>
    %62 = arith.addf %58, %61 : vector<8x8xf32>
    %cst_50 = arith.constant 0.000000e+00 : f32
    %63 = vector.broadcast %cst_50 : f32 to vector<1x8xf32>
    %64 = arith.cmpf ogt, %4, %63 : vector<1x8xf32>
    %cst_51 = arith.constant -9.000000e+15 : f32
    %65 = vector.shape_cast %64 : vector<1x8xi1> to vector<1x8xi1>
    %66 = vector.broadcast %65 : vector<1x8xi1> to vector<8x8xi1>
    %67 = vector.broadcast %cst_51 : f32 to vector<8x8xf32>
    %68 = arith.select %66, %62, %67 : vector<8x8xi1>, vector<8x8xf32>
    %cst_52 = arith.constant dense<0xFF800000> : vector<8xf32>
    %69 = vector.multi_reduction <maximumf>, %68, %cst_52 [1] : vector<8x8xf32> to vector<8xf32>
    %70 = vector.shape_cast %69 : vector<8xf32> to vector<8x1xf32>
    %71 = vector.broadcast %70 : vector<8x1xf32> to vector<8x8xf32>
    %72 = arith.subf %68, %71 : vector<8x8xf32>
    %73 = math.exp %72 : vector<8x8xf32>
    %cst_53 = arith.constant dense<0.000000e+00> : vector<8xf32>
    %74 = vector.multi_reduction <add>, %73, %cst_53 [1] : vector<8x8xf32> to vector<8xf32>
    %75 = vector.shape_cast %74 : vector<8xf32> to vector<8x1xf32>
    %76 = vector.broadcast %75 : vector<8x1xf32> to vector<8x8xf32>
    %77 = arith.divf %73, %76 : vector<8x8xf32>
    %c0_54 = arith.constant 0 : index
    %c1_55 = arith.constant 1 : index
    %c0_56 = arith.constant 0 : index
    %c0_57 = arith.constant 0 : index
    %78 = vector.load %arg9[%c0_54, %c1_55, %c0_56, %c0_57] : memref<1x4x8x8xf32, #tpu.memory_space<vmem>>, vector<1x1x8x8xf32>
    %79 = vector.shape_cast %78 : vector<1x1x8x8xf32> to vector<8x8xf32>
    %80 = vector.shape_cast %77 : vector<8x8xf32> to vector<1x1x8x8xf32>
    tpu.vector_store %arg9[%c0_54, %c1_55, %c0_56, %c0_57], %80 {strides = array<i32>} : memref<1x4x8x8xf32, #tpu.memory_space<vmem>>, vector<1x1x8x8xf32>,
    %81 = arith.truncf %77 : vector<8x8xf32> to vector<8x8xbf16>
    %82 = arith.truncf %53 : vector<8x8xf32> to vector<8x8xbf16>
    %cst_58 = arith.constant dense<0.000000e+00> : vector<8x8xf32>
    %83 = tpu.matmul %81, %82, %cst_58 {dimension_numbers = #tpu.dot_dimension_numbers<[1], [0], [0], [1], [0, 0, 1, 1], [], []>} : vector<8x8xbf16>, vector<8x8xbf16>, vector<8x8xf32> -> vector<8x8xf32>
    %c0_59 = arith.constant 0 : index
    %c8 = arith.constant 8 : index
    %84 = vector.load %arg11[%c0_59, %c8] : memref<8x32xf32, #tpu.memory_space<vmem>>, vector<8x8xf32>
    tpu.vector_store %arg11[%c0_59, %c8], %83 {strides = array<i32>} : memref<8x32xf32, #tpu.memory_space<vmem>>, vector<8x8xf32>,
    %c2 = arith.constant 2 : index
    %c0_60 = arith.constant 0 : index
    %c0_61 = arith.constant 0 : index
    %85 = vector.load %arg4[%c2, %c0_60, %c0_61] : memref<4x32x8xbf16, #tpu.memory_space<vmem>>, vector<1x32x8xbf16>
    %86 = vector.shape_cast %85 : vector<1x32x8xbf16> to vector<32x8xbf16>
    %cst_62 = arith.constant dense<0.000000e+00> : vector<8x8xf32>
    %87 = tpu.matmul %2, %86, %cst_62 {dimension_numbers = #tpu.dot_dimension_numbers<[1], [0], [0], [1], [0, 0, 1, 1], [], []>} : vector<8x32xbf16>, vector<32x8xbf16>, vector<8x8xf32> -> vector<8x8xf32>
    %c2_63 = arith.constant 2 : index
    %c0_64 = arith.constant 0 : index
    %c0_65 = arith.constant 0 : index
    %88 = vector.load %arg5[%c2_63, %c0_64, %c0_65] : memref<4x32x8xbf16, #tpu.memory_space<vmem>>, vector<1x32x8xbf16>
    %89 = vector.shape_cast %88 : vector<1x32x8xbf16> to vector<32x8xbf16>
    %cst_66 = arith.constant dense<0.000000e+00> : vector<8x8xf32>
    %90 = tpu.matmul %2, %89, %cst_66 {dimension_numbers = #tpu.dot_dimension_numbers<[1], [0], [0], [1], [0, 0, 1, 1], [], []>} : vector<8x32xbf16>, vector<32x8xbf16>, vector<8x8xf32> -> vector<8x8xf32>
    %c2_67 = arith.constant 2 : index
    %c0_68 = arith.constant 0 : index
    %c0_69 = arith.constant 0 : index
    %91 = vector.load %arg6[%c2_67, %c0_68, %c0_69] : memref<4x32x8xbf16, #tpu.memory_space<vmem>>, vector<1x32x8xbf16>
    %92 = vector.shape_cast %91 : vector<1x32x8xbf16> to vector<32x8xbf16>
    %cst_70 = arith.constant dense<0.000000e+00> : vector<8x8xf32>
    %93 = tpu.matmul %2, %92, %cst_70 {dimension_numbers = #tpu.dot_dimension_numbers<[1], [0], [0], [1], [0, 0, 1, 1], [], []>} : vector<8x32xbf16>, vector<32x8xbf16>, vector<8x8xf32> -> vector<8x8xf32>
    %94 = arith.truncf %87 : vector<8x8xf32> to vector<8x8xbf16>
    %95 = arith.truncf %90 : vector<8x8xf32> to vector<8x8xbf16>
    %cst_71 = arith.constant dense<0.000000e+00> : vector<8x8xf32>
    %96 = tpu.matmul %94, %95, %cst_71 {dimension_numbers = #tpu.dot_dimension_numbers<[1], [1], [0], [0], [0, 0, 1, 0], [], []>} : vector<8x8xbf16>, vector<8x8xbf16>, vector<8x8xf32> -> vector<8x8xf32>
    %cst_72 = arith.constant 0.353553385 : f32
    %97 = vector.broadcast %cst_72 : f32 to vector<8x8xf32>
    %98 = arith.mulf %96, %97 : vector<8x8xf32>
    %c0_73 = arith.constant 0 : index
    %c2_74 = arith.constant 2 : index
    %c0_75 = arith.constant 0 : index
    %c0_76 = arith.constant 0 : index
    %99 = vector.load %arg3[%c0_73, %c2_74, %c0_75, %c0_76] : memref<1x4x8x8xbf16, #tpu.memory_space<vmem>>, vector<1x1x8x8xbf16>
    %100 = vector.shape_cast %99 : vector<1x1x8x8xbf16> to vector<8x8xbf16>
    %101 = arith.extf %100 : vector<8x8xbf16> to vector<8x8xf32>
    %102 = arith.addf %98, %101 : vector<8x8xf32>
    %cst_77 = arith.constant 0.000000e+00 : f32
    %103 = vector.broadcast %cst_77 : f32 to vector<1x8xf32>
    %104 = arith.cmpf ogt, %4, %103 : vector<1x8xf32>
    %cst_78 = arith.constant -9.000000e+15 : f32
    %105 = vector.shape_cast %104 : vector<1x8xi1> to vector<1x8xi1>
    %106 = vector.broadcast %105 : vector<1x8xi1> to vector<8x8xi1>
    %107 = vector.broadcast %cst_78 : f32 to vector<8x8xf32>
    %108 = arith.select %106, %102, %107 : vector<8x8xi1>, vector<8x8xf32>
    %cst_79 = arith.constant dense<0xFF800000> : vector<8xf32>
    %109 = vector.multi_reduction <maximumf>, %108, %cst_79 [1] : vector<8x8xf32> to vector<8xf32>
    %110 = vector.shape_cast %109 : vector<8xf32> to vector<8x1xf32>
    %111 = vector.broadcast %110 : vector<8x1xf32> to vector<8x8xf32>
    %112 = arith.subf %108, %111 : vector<8x8xf32>
    %113 = math.exp %112 : vector<8x8xf32>
    %cst_80 = arith.constant dense<0.000000e+00> : vector<8xf32>
    %114 = vector.multi_reduction <add>, %113, %cst_80 [1] : vector<8x8xf32> to vector<8xf32>
    %115 = vector.shape_cast %114 : vector<8xf32> to vector<8x1xf32>
    %116 = vector.broadcast %115 : vector<8x1xf32> to vector<8x8xf32>
    %117 = arith.divf %113, %116 : vector<8x8xf32>
    %c0_81 = arith.constant 0 : index
    %c2_82 = arith.constant 2 : index
    %c0_83 = arith.constant 0 : index
    %c0_84 = arith.constant 0 : index
    %118 = vector.load %arg9[%c0_81, %c2_82, %c0_83, %c0_84] : memref<1x4x8x8xf32, #tpu.memory_space<vmem>>, vector<1x1x8x8xf32>
    %119 = vector.shape_cast %118 : vector<1x1x8x8xf32> to vector<8x8xf32>
    %120 = vector.shape_cast %117 : vector<8x8xf32> to vector<1x1x8x8xf32>
    tpu.vector_store %arg9[%c0_81, %c2_82, %c0_83, %c0_84], %120 {strides = array<i32>} : memref<1x4x8x8xf32, #tpu.memory_space<vmem>>, vector<1x1x8x8xf32>,
    %121 = arith.truncf %117 : vector<8x8xf32> to vector<8x8xbf16>
    %122 = arith.truncf %93 : vector<8x8xf32> to vector<8x8xbf16>
    %cst_85 = arith.constant dense<0.000000e+00> : vector<8x8xf32>
    %123 = tpu.matmul %121, %122, %cst_85 {dimension_numbers = #tpu.dot_dimension_numbers<[1], [0], [0], [1], [0, 0, 1, 1], [], []>} : vector<8x8xbf16>, vector<8x8xbf16>, vector<8x8xf32> -> vector<8x8xf32>
    %c0_86 = arith.constant 0 : index
    %c16 = arith.constant 16 : index
    %124 = vector.load %arg11[%c0_86, %c16] : memref<8x32xf32, #tpu.memory_space<vmem>>, vector<8x8xf32>
    tpu.vector_store %arg11[%c0_86, %c16], %123 {strides = array<i32>} : memref<8x32xf32, #tpu.memory_space<vmem>>, vector<8x8xf32>,
    %c3 = arith.constant 3 : index
    %c0_87 = arith.constant 0 : index
    %c0_88 = arith.constant 0 : index
    %125 = vector.load %arg4[%c3, %c0_87, %c0_88] : memref<4x32x8xbf16, #tpu.memory_space<vmem>>, vector<1x32x8xbf16>
    %126 = vector.shape_cast %125 : vector<1x32x8xbf16> to vector<32x8xbf16>
    %cst_89 = arith.constant dense<0.000000e+00> : vector<8x8xf32>
    %127 = tpu.matmul %2, %126, %cst_89 {dimension_numbers = #tpu.dot_dimension_numbers<[1], [0], [0], [1], [0, 0, 1, 1], [], []>} : vector<8x32xbf16>, vector<32x8xbf16>, vector<8x8xf32> -> vector<8x8xf32>
    %c3_90 = arith.constant 3 : index
    %c0_91 = arith.constant 0 : index
    %c0_92 = arith.constant 0 : index
    %128 = vector.load %arg5[%c3_90, %c0_91, %c0_92] : memref<4x32x8xbf16, #tpu.memory_space<vmem>>, vector<1x32x8xbf16>
    %129 = vector.shape_cast %128 : vector<1x32x8xbf16> to vector<32x8xbf16>
    %cst_93 = arith.constant dense<0.000000e+00> : vector<8x8xf32>
    %130 = tpu.matmul %2, %129, %cst_93 {dimension_numbers = #tpu.dot_dimension_numbers<[1], [0], [0], [1], [0, 0, 1, 1], [], []>} : vector<8x32xbf16>, vector<32x8xbf16>, vector<8x8xf32> -> vector<8x8xf32>
    %c3_94 = arith.constant 3 : index
    %c0_95 = arith.constant 0 : index
    %c0_96 = arith.constant 0 : index
    %131 = vector.load %arg6[%c3_94, %c0_95, %c0_96] : memref<4x32x8xbf16, #tpu.memory_space<vmem>>, vector<1x32x8xbf16>
    %132 = vector.shape_cast %131 : vector<1x32x8xbf16> to vector<32x8xbf16>
    %cst_97 = arith.constant dense<0.000000e+00> : vector<8x8xf32>
    %133 = tpu.matmul %2, %132, %cst_97 {dimension_numbers = #tpu.dot_dimension_numbers<[1], [0], [0], [1], [0, 0, 1, 1], [], []>} : vector<8x32xbf16>, vector<32x8xbf16>, vector<8x8xf32> -> vector<8x8xf32>
    %134 = arith.truncf %127 : vector<8x8xf32> to vector<8x8xbf16>
    %135 = arith.truncf %130 : vector<8x8xf32> to vector<8x8xbf16>
    %cst_98 = arith.constant dense<0.000000e+00> : vector<8x8xf32>
    %136 = tpu.matmul %134, %135, %cst_98 {dimension_numbers = #tpu.dot_dimension_numbers<[1], [1], [0], [0], [0, 0, 1, 0], [], []>} : vector<8x8xbf16>, vector<8x8xbf16>, vector<8x8xf32> -> vector<8x8xf32>
    %cst_99 = arith.constant 0.353553385 : f32
    %137 = vector.broadcast %cst_99 : f32 to vector<8x8xf32>
    %138 = arith.mulf %136, %137 : vector<8x8xf32>
    %c0_100 = arith.constant 0 : index
    %c3_101 = arith.constant 3 : index
    %c0_102 = arith.constant 0 : index
    %c0_103 = arith.constant 0 : index
    %139 = vector.load %arg3[%c0_100, %c3_101, %c0_102, %c0_103] : memref<1x4x8x8xbf16, #tpu.memory_space<vmem>>, vector<1x1x8x8xbf16>
    %140 = vector.shape_cast %139 : vector<1x1x8x8xbf16> to vector<8x8xbf16>
    %141 = arith.extf %140 : vector<8x8xbf16> to vector<8x8xf32>
    %142 = arith.addf %138, %141 : vector<8x8xf32>
    %cst_104 = arith.constant 0.000000e+00 : f32
    %143 = vector.broadcast %cst_104 : f32 to vector<1x8xf32>
    %144 = arith.cmpf ogt, %4, %143 : vector<1x8xf32>
    %cst_105 = arith.constant -9.000000e+15 : f32
    %145 = vector.shape_cast %144 : vector<1x8xi1> to vector<1x8xi1>
    %146 = vector.broadcast %145 : vector<1x8xi1> to vector<8x8xi1>
    %147 = vector.broadcast %cst_105 : f32 to vector<8x8xf32>
    %148 = arith.select %146, %142, %147 : vector<8x8xi1>, vector<8x8xf32>
    %cst_106 = arith.constant dense<0xFF800000> : vector<8xf32>
    %149 = vector.multi_reduction <maximumf>, %148, %cst_106 [1] : vector<8x8xf32> to vector<8xf32>
    %150 = vector.shape_cast %149 : vector<8xf32> to vector<8x1xf32>
    %151 = vector.broadcast %150 : vector<8x1xf32> to vector<8x8xf32>
    %152 = arith.subf %148, %151 : vector<8x8xf32>
    %153 = math.exp %152 : vector<8x8xf32>
    %cst_107 = arith.constant dense<0.000000e+00> : vector<8xf32>
    %154 = vector.multi_reduction <add>, %153, %cst_107 [1] : vector<8x8xf32> to vector<8xf32>
    %155 = vector.shape_cast %154 : vector<8xf32> to vector<8x1xf32>
    %156 = vector.broadcast %155 : vector<8x1xf32> to vector<8x8xf32>
    %157 = arith.divf %153, %156 : vector<8x8xf32>
    %c0_108 = arith.constant 0 : index
    %c3_109 = arith.constant 3 : index
    %c0_110 = arith.constant 0 : index
    %c0_111 = arith.constant 0 : index
    %158 = vector.load %arg9[%c0_108, %c3_109, %c0_110, %c0_111] : memref<1x4x8x8xf32, #tpu.memory_space<vmem>>, vector<1x1x8x8xf32>
    %159 = vector.shape_cast %158 : vector<1x1x8x8xf32> to vector<8x8xf32>
    %160 = vector.shape_cast %157 : vector<8x8xf32> to vector<1x1x8x8xf32>
    tpu.vector_store %arg9[%c0_108, %c3_109, %c0_110, %c0_111], %160 {strides = array<i32>} : memref<1x4x8x8xf32, #tpu.memory_space<vmem>>, vector<1x1x8x8xf32>,
    %161 = arith.truncf %157 : vector<8x8xf32> to vector<8x8xbf16>
    %162 = arith.truncf %133 : vector<8x8xf32> to vector<8x8xbf16>
    %cst_112 = arith.constant dense<0.000000e+00> : vector<8x8xf32>
    %163 = tpu.matmul %161, %162, %cst_112 {dimension_numbers = #tpu.dot_dimension_numbers<[1], [0], [0], [1], [0, 0, 1, 1], [], []>} : vector<8x8xbf16>, vector<8x8xbf16>, vector<8x8xf32> -> vector<8x8xf32>
    %c0_113 = arith.constant 0 : index
    %c24 = arith.constant 24 : index
    %164 = vector.load %arg11[%c0_113, %c24] : memref<8x32xf32, #tpu.memory_space<vmem>>, vector<8x8xf32>
    tpu.vector_store %arg11[%c0_113, %c24], %163 {strides = array<i32>} : memref<8x32xf32, #tpu.memory_space<vmem>>, vector<8x8xf32>,
    %c0_114 = arith.constant 0 : index
    %c0_115 = arith.constant 0 : index
    %165 = vector.load %arg11[%c0_114, %c0_115] : memref<8x32xf32, #tpu.memory_space<vmem>>, vector<8x32xf32>
    %166 = arith.addf %1, %165 : vector<8x32xf32>
    %cst_116 = arith.constant dense<0.000000e+00> : vector<8xf32>
    %167 = vector.multi_reduction <add>, %166, %cst_116 [1] : vector<8x32xf32> to vector<8xf32>
    %168 = vector.shape_cast %167 : vector<8xf32> to vector<8x1xf32>
    %cst_117 = arith.constant 3.200000e+01 : f32
    %169 = vector.broadcast %cst_117 : f32 to vector<8x1xf32>
    %170 = arith.divf %168, %169 : vector<8x1xf32>
    %171 = vector.broadcast %170 : vector<8x1xf32> to vector<8x32xf32>
    %172 = arith.subf %166, %171 : vector<8x32xf32>
    %173 = arith.mulf %172, %172 : vector<8x32xf32>
    %cst_118 = arith.constant dense<0.000000e+00> : vector<8xf32>
    %174 = vector.multi_reduction <add>, %173, %cst_118 [1] : vector<8x32xf32> to vector<8xf32>
    %175 = vector.shape_cast %174 : vector<8xf32> to vector<8x1xf32>
    %cst_119 = arith.constant 3.200000e+01 : f32
    %176 = vector.broadcast %cst_119 : f32 to vector<8x1xf32>
    %177 = arith.divf %175, %176 : vector<8x1xf32>
    %178 = vector.broadcast %170 : vector<8x1xf32> to vector<8x32xf32>
    %179 = arith.subf %166, %178 : vector<8x32xf32>
    %cst_120 = arith.constant 9.99999997E-7 : f32
    %180 = vector.broadcast %cst_120 : f32 to vector<8x1xf32>
    %181 = arith.addf %177, %180 : vector<8x1xf32>
    %182 = math.rsqrt %181 : vector<8x1xf32>
    %183 = vector.broadcast %182 : vector<8x1xf32> to vector<8x32xf32>
    %184 = arith.mulf %179, %183 : vector<8x32xf32>
    %c0_121 = arith.constant 0 : index
    %c0_122 = arith.constant 0 : index
    %185 = vector.load %arg7[%c0_121, %c0_122] : memref<1x32xf32, #tpu.memory_space<vmem>>, vector<1x32xf32>
    %186 = vector.broadcast %185 : vector<1x32xf32> to vector<8x32xf32>
    %187 = arith.mulf %184, %186 : vector<8x32xf32>
    %c0_123 = arith.constant 0 : index
    %c0_124 = arith.constant 0 : index
    %188 = vector.load %arg8[%c0_123, %c0_124] : memref<1x32xf32, #tpu.memory_space<vmem>>, vector<1x32xf32>
    %189 = vector.broadcast %188 : vector<1x32xf32> to vector<8x32xf32>
    %190 = arith.addf %187, %189 : vector<8x32xf32>
    %c0_125 = arith.constant 0 : index
    %c0_126 = arith.constant 0 : index
    %c0_127 = arith.constant 0 : index
    %191 = vector.load %arg10[%c0_125, %c0_126, %c0_127] : memref<1x8x32xf32, #tpu.memory_space<vmem>>, vector<1x8x32xf32>
    %192 = vector.shape_cast %191 : vector<1x8x32xf32> to vector<8x32xf32>
    %193 = vector.shape_cast %190 : vector<8x32xf32> to vector<1x8x32xf32>
    tpu.vector_store %arg10[%c0_125, %c0_126, %c0_127], %193 {strides = array<i32>} : memref<1x8x32xf32, #tpu.memory_space<vmem>>, vector<1x8x32xf32>,
    return
  }
  func.func @transform_0(%arg0: i32) -> (i32, i32, i32) {
    %c0_i32 = arith.constant 0 : i32
    %c0_i32_0 = arith.constant 0 : i32
    %c0_i32_1 = arith.constant 0 : i32
    return %arg0, %c0_i32, %c0_i32_0 : i32, i32, i32
  }
  func.func @transform_1(%arg0: i32) -> (i32, i32, i32) {
    %c0_i32 = arith.constant 0 : i32
    %c0_i32_0 = arith.constant 0 : i32
    %c0_i32_1 = arith.constant 0 : i32
    return %arg0, %c0_i32, %c0_i32_0 : i32, i32, i32
  }
  func.func @transform_2(%arg0: i32) -> (i32, i32, i32, i32) {
    %c0_i32 = arith.constant 0 : i32
    %c0_i32_0 = arith.constant 0 : i32
    %c0_i32_1 = arith.constant 0 : i32
    %c0_i32_2 = arith.constant 0 : i32
    return %arg0, %c0_i32, %c0_i32_0, %c0_i32_1 : i32, i32, i32, i32
  }
  func.func @transform_3(%arg0: i32) -> (i32, i32, i32) {
    %c0_i32 = arith.constant 0 : i32
    %c0_i32_0 = arith.constant 0 : i32
    %c0_i32_1 = arith.constant 0 : i32
    %c0_i32_2 = arith.constant 0 : i32
    return %c0_i32, %c0_i32_0, %c0_i32_1 : i32, i32, i32
  }
  func.func @transform_4(%arg0: i32) -> (i32, i32, i32) {
    %c0_i32 = arith.constant 0 : i32
    %c0_i32_0 = arith.constant 0 : i32
    %c0_i32_1 = arith.constant 0 : i32
    %c0_i32_2 = arith.constant 0 : i32
    return %c0_i32, %c0_i32_0, %c0_i32_1 : i32, i32, i32
  }
  func.func @transform_5(%arg0: i32) -> (i32, i32, i32) {
    %c0_i32 = arith.constant 0 : i32
    %c0_i32_0 = arith.constant 0 : i32
    %c0_i32_1 = arith.constant 0 : i32
    %c0_i32_2 = arith.constant 0 : i32
    return %c0_i32, %c0_i32_0, %c0_i32_1 : i32, i32, i32
  }
  func.func @transform_6(%arg0: i32) -> (i32, i32) {
    %c0_i32 = arith.constant 0 : i32
    %c0_i32_0 = arith.constant 0 : i32
    %c0_i32_1 = arith.constant 0 : i32
    return %c0_i32, %c0_i32_0 : i32, i32
  }
  func.func @transform_7(%arg0: i32) -> (i32, i32) {
    %c0_i32 = arith.constant 0 : i32
    %c0_i32_0 = arith.constant 0 : i32
    %c0_i32_1 = arith.constant 0 : i32
    return %c0_i32, %c0_i32_0 : i32, i32
  }
  func.func @transform_8(%arg0: i32) -> (i32, i32, i32, i32) {
    %c0_i32 = arith.constant 0 : i32
    %c0_i32_0 = arith.constant 0 : i32
    %c0_i32_1 = arith.constant 0 : i32
    %c0_i32_2 = arith.constant 0 : i32
    return %arg0, %c0_i32, %c0_i32_0, %c0_i32_1 : i32, i32, i32, i32
  }
  func.func @transform_9(%arg0: i32) -> (i32, i32, i32) {
    %c0_i32 = arith.constant 0 : i32
    %c0_i32_0 = arith.constant 0 : i32
    %c0_i32_1 = arith.constant 0 : i32
    return %arg0, %c0_i32, %c0_i32_0 : i32, i32, i32
  }
}

</mosaic_0001>

<llo_original>
// kernel: tpu_custom_call.1
$region0: #{tpu_custom_call.1}
  #allocation0 [shape = 'u32[]', space=smem, size = 0x4, offset = 0x4, fixed_abs, tag = 'smem constant byte address 0x4 - core index']
  #allocation1 [shape = 'u32[144,128]{1,0:T(1,128)}', space=vmem, size = 0x12000, scoped, tag = 'internal scratch']
  #allocation2 [shape = 'f32[8,32]{1,0:T(8,128)}', space=vmem, size = 0x1000, scoped, tag = 'scratch operand']
  %s0 = inlined_call_operand.hbm [shape: f32[2,8,32], index: 0, kind: input, shape index: {}]
  %s1 = inlined_call_operand.hbm [shape: f32[2,1,8], index: 1, kind: input, shape index: {}]
  %s2 = inlined_call_operand.hbm [shape: bf16[2,4,8,8], index: 2, kind: input, shape index: {}]
  %s3 = inlined_call_operand.hbm [shape: bf16[4,32,8], index: 3, kind: input, shape index: {}]
  %s4 = inlined_call_operand.hbm [shape: bf16[4,32,8], index: 4, kind: input, shape index: {}]
  %s5 = inlined_call_operand.hbm [shape: bf16[4,32,8], index: 5, kind: input, shape index: {}]
  %s6 = inlined_call_operand.hbm [shape: f32[1,32], index: 6, kind: input, shape index: {}]
  %s7 = inlined_call_operand.hbm [shape: f32[1,32], index: 7, kind: input, shape index: {}]
  %s8 = inlined_call_operand.hbm [shape: f32[2,4,8,8], index: 8, kind: output, shape index: {0}]
  %s9 = inlined_call_operand.hbm [shape: f32[2,8,32], index: 9, kind: output, shape index: {1}]
  %10 = xla_tuple %s8, %s9
  %s11 = sld [smem:[#allocation0]]
  $region105: #{tpu_custom_call.1} parent=0
    _
  %s13 = ssub.s32 1, %s11
  %s14 = scalar_select 0, %s13, %s11
  $region1: #{tpu_custom_call.1} parent=0
    #allocation3 [shape = 'u8[8192]{0}', space=vmem, size = 0x2000, scoped, tag = 'input window, operand 0']
    #allocation4 [shape = 's32[2]{0}', space=sflag, size = 0x8, scoped, tag = 'scoped memory for tpu_custom_call.1']
    #allocation5 [shape = 's32[2]{0}', space=sflag, size = 0x8, scoped, tag = 'scoped memory for tpu_custom_call.1']
    #allocation6 [shape = 'u8[1024]{0}', space=vmem, size = 0x400, scoped, tag = 'input window, operand 1']
    #allocation7 [shape = 's32[2]{0}', space=sflag, size = 0x8, scoped, tag = 'scoped memory for tpu_custom_call.1']
    #allocation8 [shape = 'u8[16384]{0}', space=vmem, size = 0x4000, scoped, tag = 'input window, operand 2']
    #allocation9 [shape = 'u8[32768]{0}', space=vmem, size = 0x8000, scoped, tag = 'input window, operand 3, single buffered']
    #allocation10 [shape = 's32[1]{0}', space=sflag, size = 0x4, scoped, tag = 'scoped memory for tpu_custom_call.1']
    #allocation11 [shape = 'u8[32768]{0}', space=vmem, size = 0x8000, scoped, tag = 'input window, operand 4, single buffered']
    #allocation12 [shape = 'u8[32768]{0}', space=vmem, size = 0x8000, scoped, tag = 'input window, operand 5, single buffered']
    #allocation13 [shape = 's32[1]{0}', space=sflag, size = 0x4, scoped, tag = 'scoped memory for tpu_custom_call.1']
    #allocation14 [shape = 'u8[512]{0}', space=vmem, size = 0x400, scoped, tag = 'input window, operand 6, single buffered']
    #allocation15 [shape = 'u8[512]{0}', space=vmem, size = 0x400, scoped, tag = 'input window, operand 7, single buffered']
    #allocation16 [shape = 's32[1]{0}', space=sflag, size = 0x4, scoped, tag = 'scoped memory for tpu_custom_call.1']
    #allocation17 [shape = 'u8[32768]{0}', space=vmem, size = 0x8000, scoped, tag = 'output window, operand 0']
    #allocation18 [shape = 'u8[8192]{0}', space=vmem, size = 0x2000, scoped, tag = 'output window, operand 1']
    #allocation19 [shape = 's32[2]{0}', space=sflag, size = 0x8, scoped, tag = 'scoped memory for tpu_custom_call.1']
    %15 = vsyncpa [#allocation4], 0
    %s16 = scalar_lea.sflag [#allocation4], 1
    %17 = vsyncpa %s16, 0
    %18 = vsyncpa [#allocation7], 0
    %s19 = scalar_lea.sflag [#allocation7], 1
    %20 = vsyncpa %s19, 0
    %21 = vsyncpa [#allocation10], 0
    %22 = vsyncpa [#allocation13], 0
    %23 = vsyncpa [#allocation16], 0
    %24 = vsyncpa [#allocation5], 0
    %s25 = scalar_lea.sflag [#allocation5], 1
    %26 = vsyncpa %s25, 0
    %27 = vsyncpa [#allocation19], 0
    %s28 = scalar_lea.sflag [#allocation19], 1
    %29 = vsyncpa %s28, 0
    loop: start=0, step=1, limit=4
    $region2: #{tpu_custom_call.1} parent=1 // loop_pre_header
      _
    $region3: #{tpu_custom_call.1} parent=1 // loop_header
      %s31 = sphi 0, %s35
      %p32 = scmp.ge.s32.totalorder %s31, 4
      %s41 = sphi 0, %s43
      %s44 = sphi 0, %s41
      %s45 = sphi 0, %s44
      %s61 = sphi 0, %s45
      %s67 = sphi 0, %s69
      %s70 = sphi 0, %s67
      %s71 = sphi 0, %s70
      %s87 = sphi 0, %s71
      %s93 = sphi 0, %s95
      %s96 = sphi 0, %s93
      %s97 = sphi 0, %s96
      %s113 = sphi 0, %s97
      %s117 = sphi 0, %s117
      %s119 = sphi 0, %s117
      %s120 = sphi 0, %s119
      %s134 = sphi 0, %s120
      %s138 = sphi 0, %s138
      %s140 = sphi 0, %s138
      %s141 = sphi 0, %s140
      %s155 = sphi 0, %s141
      %s159 = sphi 0, %s159
      %s161 = sphi 0, %s159
      %s162 = sphi 0, %s161
      %s176 = sphi 0, %s162
      %s180 = sphi 0, %s180
      %s182 = sphi 0, %s180
      %s183 = sphi 0, %s182
      %s197 = sphi 0, %s183
      %s201 = sphi 0, %s201
      %s203 = sphi 0, %s201
      %s204 = sphi 0, %s203
      %s218 = sphi 0, %s204
      %s224 = sphi 0, %s226
      %s227 = sphi 0, %s224
      %s228 = sphi 0, %s227
      %s244 = sphi 0, %s228
      %s250 = sphi 0, %s252
      %s253 = sphi 0, %s250
      %s254 = sphi 0, %s253
      %s270 = sphi 0, %s254
    $region4: #{tpu_custom_call.1} parent=1 // loop_header_branch
      %34 = sbr.rel (%p32) target = $region8
    $region5: #{tpu_custom_call.1} parent=1 // loop_body
      %s36 = ssub.s32 %s31, 1
      %s37 = ssub.s32 %s31, 2
      %s38 = sadd.s32 %s31, 1
      %s39 = ssub.s32 %s31, %s38
      %p40 = scmp.eq.s32.totalorder %s39, 0
      %s42 = sadd.s32 %s41, 1
      %s43 = scalar_select %p40, %s41, %s42
      %p46 = pneg %p40
      %p47 = scmp.eq.s32.totalorder %s31, 1
      %p48 = por %p46, %p47
      %p49 = scmp.ne.s32.totalorder %s41, %s44
      %p50 = scmp.eq.s32.totalorder %s31, 0
      %p51 = por %p49, %p50
      %p52 = scmp.ne.s32.totalorder %s41, %s44
      %p53 = scmp.eq.s32.totalorder %s36, 1
      %p54 = por %p52, %p53
      %p55 = scmp.ne.s32.totalorder %s44, %s45
      %p56 = scmp.eq.s32.totalorder %s36, 0
      %p57 = por %p55, %p56
      %p58 = scmp.ne.s32.totalorder %s44, %s45
      %p59 = scmp.eq.s32.totalorder %s37, 1
      %p60 = por %p58, %p59
      %p62 = scmp.ne.s32.totalorder %s45, %s61
      %p63 = scmp.eq.s32.totalorder %s37, 0
      %p64 = por %p62, %p63
      %s65 = ssub.s32 %s31, %s38
      %p66 = scmp.eq.s32.totalorder %s65, 0
      %s68 = sadd.s32 %s67, 1
      %s69 = scalar_select %p66, %s67, %s68
      %p72 = pneg %p66
      %p73 = scmp.eq.s32.totalorder %s31, 1
      %p74 = por %p72, %p73
      %p75 = scmp.ne.s32.totalorder %s67, %s70
      %p76 = scmp.eq.s32.totalorder %s31, 0
      %p77 = por %p75, %p76
      %p78 = scmp.ne.s32.totalorder %s67, %s70
      %p79 = scmp.eq.s32.totalorder %s36, 1
      %p80 = por %p78, %p79
      %p81 = scmp.ne.s32.totalorder %s70, %s71
      %p82 = scmp.eq.s32.totalorder %s36, 0
      %p83 = por %p81, %p82
      %p84 = scmp.ne.s32.totalorder %s70, %s71
      %p85 = scmp.eq.s32.totalorder %s37, 1
      %p86 = por %p84, %p85
      %p88 = scmp.ne.s32.totalorder %s71, %s87
      %p89 = scmp.eq.s32.totalorder %s37, 0
      %p90 = por %p88, %p89
      %s91 = ssub.s32 %s31, %s38
      %p92 = scmp.eq.s32.totalorder %s91, 0
      %s94 = sadd.s32 %s93, 1
      %s95 = scalar_select %p92, %s93, %s94
      %p98 = pneg %p92
      %p99 = scmp.eq.s32.totalorder %s31, 1
      %p100 = por %p98, %p99
      %p101 = scmp.ne.s32.totalorder %s93, %s96
      %p102 = scmp.eq.s32.totalorder %s31, 0
      %p103 = por %p101, %p102
      %p104 = scmp.ne.s32.totalorder %s93, %s96
      %p105 = scmp.eq.s32.totalorder %s36, 1
      %p106 = por %p104, %p105
      %p107 = scmp.ne.s32.totalorder %s96, %s97
      %p108 = scmp.eq.s32.totalorder %s36, 0
      %p109 = por %p107, %p108
      %p110 = scmp.ne.s32.totalorder %s96, %s97
      %p111 = scmp.eq.s32.totalorder %s37, 1
      %p112 = por %p110, %p111
      %p114 = scmp.ne.s32.totalorder %s97, %s113
      %p115 = scmp.eq.s32.totalorder %s37, 0
      %p116 = por %p114, %p115
      %s118 = sadd.s32 %s117, 1
      %p121 = scmp.eq.s32.totalorder %s31, 1
      %p122 = scmp.ne.s32.totalorder %s117, %s119
      %p123 = scmp.eq.s32.totalorder %s31, 0
      %p124 = por %p122, %p123
      %p125 = scmp.ne.s32.totalorder %s117, %s119
      %p126 = scmp.eq.s32.totalorder %s36, 1
      %p127 = por %p125, %p126
      %p128 = scmp.ne.s32.totalorder %s119, %s120
      %p129 = scmp.eq.s32.totalorder %s36, 0
      %p130 = por %p128, %p129
      %p131 = scmp.ne.s32.totalorder %s119, %s120
      %p132 = scmp.eq.s32.totalorder %s37, 1
      %p133 = por %p131, %p132
      %p135 = scmp.ne.s32.totalorder %s120, %s134
      %p136 = scmp.eq.s32.totalorder %s37, 0
      %p137 = por %p135, %p136
      %s139 = sadd.s32 %s138, 1
      %p142 = scmp.eq.s32.totalorder %s31, 1
      %p143 = scmp.ne.s32.totalorder %s138, %s140
      %p144 = scmp.eq.s32.totalorder %s31, 0
      %p145 = por %p143, %p144
      %p146 = scmp.ne.s32.totalorder %s138, %s140
      %p147 = scmp.eq.s32.totalorder %s36, 1
      %p148 = por %p146, %p147
      %p149 = scmp.ne.s32.totalorder %s140, %s141
      %p150 = scmp.eq.s32.totalorder %s36, 0
      %p151 = por %p149, %p150
      %p152 = scmp.ne.s32.totalorder %s140, %s141
      %p153 = scmp.eq.s32.totalorder %s37, 1
      %p154 = por %p152, %p153
      %p156 = scmp.ne.s32.totalorder %s141, %s155
      %p157 = scmp.eq.s32.totalorder %s37, 0
      %p158 = por %p156, %p157
      %s160 = sadd.s32 %s159, 1
      %p163 = scmp.eq.s32.totalorder %s31, 1
      %p164 = scmp.ne.s32.totalorder %s159, %s161
      %p165 = scmp.eq.s32.totalorder %s31, 0
      %p166 = por %p164, %p165
      %p167 = scmp.ne.s32.totalorder %s159, %s161
      %p168 = scmp.eq.s32.totalorder %s36, 1
      %p169 = por %p167, %p168
      %p170 = scmp.ne.s32.totalorder %s161, %s162
      %p171 = scmp.eq.s32.totalorder %s36, 0
      %p172 = por %p170, %p171
      %p173 = scmp.ne.s32.totalorder %s161, %s162
      %p174 = scmp.eq.s32.totalorder %s37, 1
      %p175 = por %p173, %p174
      %p177 = scmp.ne.s32.totalorder %s162, %s176
      %p178 = scmp.eq.s32.totalorder %s37, 0
      %p179 = por %p177, %p178
      %s181 = sadd.s32 %s180, 1
      %p184 = scmp.eq.s32.totalorder %s31, 1
      %p185 = scmp.ne.s32.totalorder %s180, %s182
      %p186 = scmp.eq.s32.totalorder %s31, 0
      %p187 = por %p185, %p186
      %p188 = scmp.ne.s32.totalorder %s180, %s182
      %p189 = scmp.eq.s32.totalorder %s36, 1
      %p190 = por %p188, %p189
      %p191 = scmp.ne.s32.totalorder %s182, %s183
      %p192 = scmp.eq.s32.totalorder %s36, 0
      %p193 = por %p191, %p192
      %p194 = scmp.ne.s32.totalorder %s182, %s183
      %p195 = scmp.eq.s32.totalorder %s37, 1
      %p196 = por %p194, %p195
      %p198 = scmp.ne.s32.totalorder %s183, %s197
      %p199 = scmp.eq.s32.totalorder %s37, 0
      %p200 = por %p198, %p199
      %s202 = sadd.s32 %s201, 1
      %p205 = scmp.eq.s32.totalorder %s31, 1
      %p206 = scmp.ne.s32.totalorder %s201, %s203
      %p207 = scmp.eq.s32.totalorder %s31, 0
      %p208 = por %p206, %p207
      %p209 = scmp.ne.s32.totalorder %s201, %s203
      %p210 = scmp.eq.s32.totalorder %s36, 1
      %p211 = por %p209, %p210
      %p212 = scmp.ne.s32.totalorder %s203, %s204
      %p213 = scmp.eq.s32.totalorder %s36, 0
      %p214 = por %p212, %p213
      %p215 = scmp.ne.s32.totalorder %s203, %s204
      %p216 = scmp.eq.s32.totalorder %s37, 1
      %p217 = por %p215, %p216
      %p219 = scmp.ne.s32.totalorder %s204, %s218
      %p220 = scmp.eq.s32.totalorder %s37, 0
      %p221 = por %p219, %p220
      %s222 = ssub.s32 %s31, %s38
      %p223 = scmp.eq.s32.totalorder %s222, 0
      %s225 = sadd.s32 %s224, 1
      %s226 = scalar_select %p223, %s224, %s225
      %p229 = pneg %p223
      %p230 = scmp.eq.s32.totalorder %s31, 1
      %p231 = por %p229, %p230
      %p232 = scmp.ne.s32.totalorder %s224, %s227
      %p233 = scmp.eq.s32.totalorder %s31, 0
      %p234 = por %p232, %p233
      %p235 = scmp.ne.s32.totalorder %s224, %s227
      %p236 = scmp.eq.s32.totalorder %s36, 1
      %p237 = por %p235, %p236
      %p238 = scmp.ne.s32.totalorder %s227, %s228
      %p239 = scmp.eq.s32.totalorder %s36, 0
      %p240 = por %p238, %p239
      %p241 = scmp.ne.s32.totalorder %s227, %s228
      %p242 = scmp.eq.s32.totalorder %s37, 1
      %p243 = por %p241, %p242
      %p245 = scmp.ne.s32.totalorder %s228, %s244
      %p246 = scmp.eq.s32.totalorder %s37, 0
      %p247 = por %p245, %p246
      %s248 = ssub.s32 %s31, %s38
      %p249 = scmp.eq.s32.totalorder %s248, 0
      %s251 = sadd.s32 %s250, 1
      %s252 = scalar_select %p249, %s250, %s251
      %p255 = pneg %p249
      %p256 = scmp.eq.s32.totalorder %s31, 1
      %p257 = por %p255, %p256
      %p258 = scmp.ne.s32.totalorder %s250, %s253
      %p259 = scmp.eq.s32.totalorder %s31, 0
      %p260 = por %p258, %p259
      %p261 = scmp.ne.s32.totalorder %s250, %s253
      %p262 = scmp.eq.s32.totalorder %s36, 1
      %p263 = por %p261, %p262
      %p264 = scmp.ne.s32.totalorder %s253, %s254
      %p265 = scmp.eq.s32.totalorder %s36, 0
      %p266 = por %p264, %p265
      %p267 = scmp.ne.s32.totalorder %s253, %s254
      %p268 = scmp.eq.s32.totalorder %s37, 1
      %p269 = por %p267, %p268
      %p271 = scmp.ne.s32.totalorder %s254, %s270
      %p272 = scmp.eq.s32.totalorder %s37, 0
      %p273 = por %p271, %p272
      %p274 = scmp.le.s32.totalorder 1, %s31
      %p275 = scmp.lt.s32.totalorder %s31, 3
      %p276 = pnand %p274, %p275
      %p277 = pneg %p276
      // Predicated region
      $region9: #{tpu_custom_call.1} parent=5 // pred_check
        _
      $region10: #{tpu_custom_call.1} parent=5 // pred_check_branch
        %279 = sbr.rel (%p276) target = $region12
      $region11: #{tpu_custom_call.1} parent=5 // pred_region
        %s280 = ssub.s32 %s31, 1
        // Predicated region
        $region13: #{tpu_custom_call.1} parent=11 // pred_check
          %p281 = pneg %p130
        $region14: #{tpu_custom_call.1} parent=11 // pred_check_branch
          %283 = sbr.rel (%p281) target = $region16
        $region15: #{tpu_custom_call.1} parent=11 // pred_region
          %s285 = ssub.s32 1024, 1024
          %286 = vsyncadd [#allocation10], %s285
          %s287 = sshll.u32 [#allocation9], 4
          %s288 = int_to_ptr.vmem [resolvable:$true] %s287
          %293 = dma.hbm_to_vmem [thread:$0]  %s3, 1024, %s288, [#allocation10], 64, 64, 4
        $region16: #{tpu_custom_call.1} parent=11 // pred_fallthru
          _
        // Predicated region
        $region17: #{tpu_custom_call.1} parent=11 // pred_check
          %p294 = pneg %p151
        $region18: #{tpu_custom_call.1} parent=11 // pred_check_branch
          %296 = sbr.rel (%p294) target = $region20
        $region19: #{tpu_custom_call.1} parent=11 // pred_region
          %s298 = ssub.s32 1024, 1024
          %299 = vsyncadd [#allocation10], %s298
          %s300 = sshll.u32 [#allocation11], 4
          %s301 = int_to_ptr.vmem [resolvable:$true] %s300
          %306 = dma.hbm_to_vmem [thread:$0]  %s4, 1024, %s301, [#allocation10], 64, 64, 4
        $region20: #{tpu_custom_call.1} parent=11 // pred_fallthru
          _
        // Predicated region
        $region21: #{tpu_custom_call.1} parent=11 // pred_check
          %p307 = pneg %p172
        $region22: #{tpu_custom_call.1} parent=11 // pred_check_branch
          %309 = sbr.rel (%p307) target = $region24
        $region23: #{tpu_custom_call.1} parent=11 // pred_region
          %s311 = ssub.s32 1024, 1024
          %312 = vsyncadd [#allocation13], %s311
          %s313 = sshll.u32 [#allocation12], 4
          %s314 = int_to_ptr.vmem [resolvable:$true] %s313
          %319 = dma.hbm_to_vmem [thread:$0]  %s5, 1024, %s314, [#allocation13], 64, 64, 4
        $region24: #{tpu_custom_call.1} parent=11 // pred_fallthru
          _
        // Predicated region
        $region25: #{tpu_custom_call.1} parent=11 // pred_check
          %p320 = pneg %p193
        $region26: #{tpu_custom_call.1} parent=11 // pred_check_branch
          %322 = sbr.rel (%p320) target = $region28
        $region27: #{tpu_custom_call.1} parent=11 // pred_region
          %s324 = ssub.s32 16, 16
          %325 = vsyncadd [#allocation13], %s324
          %s327 = sshll.u32 [#allocation14], 4
          %s328 = int_to_ptr.vmem [resolvable:$true] %s327
          %330 = dma.hbm_to_vmem [thread:$0]  %s6, 16, %s328, [#allocation13]
        $region28: #{tpu_custom_call.1} parent=11 // pred_fallthru
          _
        // Predicated region
        $region29: #{tpu_custom_call.1} parent=11 // pred_check
          %p331 = pneg %p214
        $region30: #{tpu_custom_call.1} parent=11 // pred_check_branch
          %333 = sbr.rel (%p331) target = $region32
        $region31: #{tpu_custom_call.1} parent=11 // pred_region
          %s335 = ssub.s32 16, 16
          %336 = vsyncadd [#allocation16], %s335
          %s338 = sshll.u32 [#allocation15], 4
          %s339 = int_to_ptr.vmem [resolvable:$true] %s338
          %341 = dma.hbm_to_vmem [thread:$0]  %s7, 16, %s339, [#allocation16]
        $region32: #{tpu_custom_call.1} parent=11 // pred_fallthru
          _
      $region12: #{tpu_custom_call.1} parent=5 // pred_fallthru
        _
      %p342 = scmp.lt.s32.totalorder %s31, 2
      // Predicated region
      $region33: #{tpu_custom_call.1} parent=5 // pred_check
        %p343 = pneg %p342
      $region34: #{tpu_custom_call.1} parent=5 // pred_check_branch
        %345 = sbr.rel (%p343) target = $region36
      $region35: #{tpu_custom_call.1} parent=5 // pred_region
        // Predicated region
        $region37: #{tpu_custom_call.1} parent=35 // pred_check
          %p346 = pneg %p51
        $region38: #{tpu_custom_call.1} parent=35 // pred_check_branch
          %348 = sbr.rel (%p346) target = $region40
        $region39: #{tpu_custom_call.1} parent=35 // pred_region
          %s349 = sand.u32 %s41, 1
          %s350 = scalar_lea.sflag [#allocation4], %s349
          %s351 = sand.u32 %s41, 1
          %s352 = smul.addr %s351, 8
          %s353 = scalar_lea.vmem [#allocation3], %s352
          %s355 = ssub.s32 128, 128
          %356 = vsyncadd %s350, %s355
          %s357 = smul.addr %s31, 128
          %s358 = scalar_lea.hbm %s0, %s357
          %s360 = sshll.u32 %s353, 4
          %s361 = int_to_ptr.vmem [resolvable:$true] %s360
          %363 = dma.hbm_to_vmem [thread:$0]  %s358, 128, %s361, %s350
        $region40: #{tpu_custom_call.1} parent=35 // pred_fallthru
          _
        // Predicated region
        $region41: #{tpu_custom_call.1} parent=35 // pred_check
          %p364 = pneg %p77
        $region42: #{tpu_custom_call.1} parent=35 // pred_check_branch
          %366 = sbr.rel (%p364) target = $region44
        $region43: #{tpu_custom_call.1} parent=35 // pred_region
          %s367 = sand.u32 %s31, 1
          %s368 = scalar_lea.sflag [#allocation7], %s367
          %s369 = sand.u32 %s67, 1
          %s370 = scalar_lea.vmem [#allocation6], %s369
          %s372 = ssub.s32 16, 16
          %373 = vsyncadd %s368, %s372
          %s374 = smul.addr %s31, 16
          %s375 = scalar_lea.hbm %s1, %s374
          %s377 = sshll.u32 %s370, 4
          %s378 = int_to_ptr.vmem [resolvable:$true] %s377
          %380 = dma.hbm_to_vmem [thread:$0]  %s375, 16, %s378, %s368
        $region44: #{tpu_custom_call.1} parent=35 // pred_fallthru
          _
        // Predicated region
        $region45: #{tpu_custom_call.1} parent=35 // pred_check
          %p381 = pneg %p103
        $region46: #{tpu_custom_call.1} parent=35 // pred_check_branch
          %383 = sbr.rel (%p381) target = $region48
        $region47: #{tpu_custom_call.1} parent=35 // pred_region
          %s384 = sand.u32 %s31, 1
          %s385 = scalar_lea.sflag [#allocation7], %s384
          %s386 = sand.u32 %s93, 1
          %s387 = smul.addr %s386, 16
          %s388 = scalar_lea.vmem [#allocation8], %s387
          %s390 = ssub.s32 256, 256
          %391 = vsyncadd %s385, %s390
          %s392 = smul.addr %s31, 4
          %s393 = smul.addr %s392, 64
          %s394 = scalar_lea.hbm %s2, %s393
          %s395 = sshll.u32 %s388, 4
          %s396 = int_to_ptr.vmem [resolvable:$true] %s395
          %401 = dma.hbm_to_vmem [thread:$0]  %s394, 256, %s396, %s385, 64, 64, 4
        $region48: #{tpu_custom_call.1} parent=35 // pred_fallthru
          _
      $region36: #{tpu_custom_call.1} parent=5 // pred_fallthru
        _
      %p402 = scmp.le.s32.totalorder 1, %s31
      %p403 = scmp.lt.s32.totalorder %s31, 3
      %p404 = pnand %p402, %p403
      %p405 = pneg %p404
      // Predicated region
      $region49: #{tpu_custom_call.1} parent=5 // pred_check
        _
      $region50: #{tpu_custom_call.1} parent=5 // pred_check_branch
        %407 = sbr.rel (%p404) target = $region52
      $region51: #{tpu_custom_call.1} parent=5 // pred_region
        %s408 = ssub.s32 %s31, 1
        %s409 = sand.u32 %s44, 1
        %s410 = scalar_lea.sflag [#allocation4], %s409
        %s411 = sand.u32 %s44, 1
        %s412 = smul.addr %s411, 8
        %s413 = scalar_lea.vmem [#allocation3], %s412
        // Predicated region
        $region53: #{tpu_custom_call.1} parent=51 // pred_check
          %p414 = pneg %p57
        $region54: #{tpu_custom_call.1} parent=51 // pred_check_branch
          %416 = sbr.rel (%p414) target = $region56
        $region55: #{tpu_custom_call.1} parent=51 // pred_region
          %417 = dma.done %s410, 128
        $region56: #{tpu_custom_call.1} parent=51 // pred_fallthru
          _
        %s418 = sand.u32 %s36, 1
        %s419 = scalar_lea.sflag [#allocation7], %s418
        %s420 = sand.u32 %s70, 1
        %s421 = scalar_lea.vmem [#allocation6], %s420
        // Predicated region
        $region57: #{tpu_custom_call.1} parent=51 // pred_check
          %p422 = pneg %p83
        $region58: #{tpu_custom_call.1} parent=51 // pred_check_branch
          %424 = sbr.rel (%p422) target = $region60
        $region59: #{tpu_custom_call.1} parent=51 // pred_region
          %425 = dma.done %s419, 16
        $region60: #{tpu_custom_call.1} parent=51 // pred_fallthru
          _
        %s426 = sand.u32 %s36, 1
        %s427 = scalar_lea.sflag [#allocation7], %s426
        %s428 = sand.u32 %s96, 1
        %s429 = smul.addr %s428, 16
        %s430 = scalar_lea.vmem [#allocation8], %s429
        // Predicated region
        $region61: #{tpu_custom_call.1} parent=51 // pred_check
          %p431 = pneg %p109
        $region62: #{tpu_custom_call.1} parent=51 // pred_check_branch
          %433 = sbr.rel (%p431) target = $region64
        $region63: #{tpu_custom_call.1} parent=51 // pred_region
          %434 = dma.done %s427, 256
        $region64: #{tpu_custom_call.1} parent=51 // pred_fallthru
          _
        // Predicated region
        $region65: #{tpu_custom_call.1} parent=51 // pred_check
          %p435 = pneg %p130
        $region66: #{tpu_custom_call.1} parent=51 // pred_check_branch
          %437 = sbr.rel (%p435) target = $region68
        $region67: #{tpu_custom_call.1} parent=51 // pred_region
          %438 = dma.done [#allocation10], 1024
        $region68: #{tpu_custom_call.1} parent=51 // pred_fallthru
          _
        // Predicated region
        $region69: #{tpu_custom_call.1} parent=51 // pred_check
          %p439 = pneg %p151
        $region70: #{tpu_custom_call.1} parent=51 // pred_check_branch
          %441 = sbr.rel (%p439) target = $region72
        $region71: #{tpu_custom_call.1} parent=51 // pred_region
          %442 = dma.done [#allocation10], 1024
        $region72: #{tpu_custom_call.1} parent=51 // pred_fallthru
          _
        // Predicated region
        $region73: #{tpu_custom_call.1} parent=51 // pred_check
          %p443 = pneg %p172
        $region74: #{tpu_custom_call.1} parent=51 // pred_check_branch
          %445 = sbr.rel (%p443) target = $region76
        $region75: #{tpu_custom_call.1} parent=51 // pred_region
          %446 = dma.done [#allocation13], 1024
        $region76: #{tpu_custom_call.1} parent=51 // pred_fallthru
          _
        // Predicated region
        $region77: #{tpu_custom_call.1} parent=51 // pred_check
          %p447 = pneg %p193
        $region78: #{tpu_custom_call.1} parent=51 // pred_check_branch
          %449 = sbr.rel (%p447) target = $region80
        $region79: #{tpu_custom_call.1} parent=51 // pred_region
          %450 = dma.done [#allocation13], 16
        $region80: #{tpu_custom_call.1} parent=51 // pred_fallthru
          _
        // Predicated region
        $region81: #{tpu_custom_call.1} parent=51 // pred_check
          %p451 = pneg %p214
        $region82: #{tpu_custom_call.1} parent=51 // pred_check_branch
          %453 = sbr.rel (%p451) target = $region84
        $region83: #{tpu_custom_call.1} parent=51 // pred_region
          %454 = dma.done [#allocation16], 16
        $region84: #{tpu_custom_call.1} parent=51 // pred_fallthru
          _
        %s455 = sand.u32 %s44, 1
        %s456 = scalar_lea.sflag [#allocation4], %s455
        %s457 = sand.u32 %s44, 1
        %s458 = smul.addr %s457, 8
        %s459 = scalar_lea.vmem [#allocation3], %s458
        %p460 = pneg %p57
        %p461 = pneg %p54
        %s462 = sand.u32 %s36, 1
        %s463 = scalar_lea.sflag [#allocation7], %s462
        %s464 = sand.u32 %s70, 1
        %s465 = scalar_lea.vmem [#allocation6], %s464
        %p466 = pneg %p83
        %p467 = pneg %p80
        %s468 = sand.u32 %s36, 1
        %s469 = scalar_lea.sflag [#allocation7], %s468
        %s470 = sand.u32 %s96, 1
        %s471 = smul.addr %s470, 16
        %s472 = scalar_lea.vmem [#allocation8], %s471
        %p473 = pneg %p109
        %p474 = pneg %p106
        %p475 = pneg %p130
        %p476 = pneg %p127
        %p477 = pneg %p151
        %p478 = pneg %p148
        %p479 = pneg %p172
        %p480 = pneg %p169
        %p481 = pneg %p193
        %p482 = pneg %p190
        %p483 = pneg %p214
        %p484 = pneg %p211
        %p485 = pneg %p240
        %p486 = pneg %p237
        %s487 = sand.u32 %s227, 1
        %s488 = scalar_lea.sflag [#allocation5], %s487
        %s489 = sand.u32 %s227, 1
        %s490 = smul.addr %s489, 32
        %s491 = scalar_lea.vmem [#allocation17], %s490
        %p492 = pneg %p266
        %p493 = pneg %p263
        %s494 = sand.u32 %s253, 1
        %s495 = scalar_lea.sflag [#allocation19], %s494
        %s496 = sand.u32 %s253, 1
        %s497 = smul.addr %s496, 8
        %s498 = scalar_lea.vmem [#allocation18], %s497
        %v500 = vld [vmem:[%s413] sm:$0xff]
        %v501 = vpack.c.bf16 %v500, %v500
        %v502 = vld [vmem:[%s421] sm:$0x1]
        %v503 = vld [vmem:[#allocation9] sm:$0xf]
        %v504 = vld [vmem:[#allocation9 + $0x4] sm:$0xf]
        %v505 = vld [vmem:[#allocation9 + $0x8] sm:$0xf]
        %v506 = vld [vmem:[#allocation9 + $0xc] sm:$0xf]
        %v511 = vunpack.c.l.b16 %v503
        %v512 = vunpack.c.l.b16 %v504
        %v513 = vunpack.c.l.b16 %v505
        %v514 = vunpack.c.l.b16 %v506
        %v515 = vpack.c.b16 %v512, %v511
        %v516 = vpack.c.b16 %v514, %v513
        %vm519 = vcmask 261120
        %v521 = vsel %vm519, %v501, 0
        %523 = vmatprep.subr.bf16.mxu0 0
        %524 = vmatpush1.bf16.msra.mxu0 %v515
        %525 = vmatprep.subr.bf16.mxu0 0
        %526 = vmatpush1.bf16.msra.mxu0 %v516
        %527 = vmatprep.subr.bf16.mxu0 0
        %528 = vmatpush1.bf16.msra.mxu0 0
        %529 = vmatprep.subr.bf16.mxu0 0
        %530 = vmatpush1.bf16.msra.mxu0 0
        %531 = vmatprep.subr.bf16.mxu0 0
        %532 = vmatpush1.bf16.msra.mxu0 0
        %533 = vmatprep.subr.bf16.mxu0 0
        %534 = vmatpush1.bf16.msra.mxu0 0
        %535 = vmatprep.subr.bf16.mxu0 0
        %536 = vmatpush1.bf16.msra.mxu0 0
        %537 = vmatprep.subr.bf16.mxu0 0
        %538 = vmatpush1.bf16.msra.mxu0 0
        %539 = vmatprep.subr.bf16.mxu0 0
        %540 = vmatpush1.bf16.msra.mxu0 0
        %541 = vmatprep.subr.bf16.mxu0 0
        %542 = vmatpush1.bf16.msra.mxu0 0
        %543 = vmatprep.subr.bf16.mxu0 0
        %544 = vmatpush1.bf16.msra.mxu0 0
        %545 = vmatprep.subr.bf16.mxu0 0
        %546 = vmatpush1.bf16.msra.mxu0 0
        %547 = vmatprep.subr.bf16.mxu0 0
        %548 = vmatpush1.bf16.msra.mxu0 0
        %549 = vmatprep.subr.bf16.mxu0 0
        %550 = vmatpush1.bf16.msra.mxu0 0
        %551 = vmatprep.subr.bf16.mxu0 0
        %552 = vmatpush1.bf16.msra.mxu0 0
        %553 = vmatprep.subr.bf16.mxu0 0
        %554 = vmatpush1.bf16.msra.mxu0 0
        %555 = vmatprep.mubr.bf16.mxu0 0
        %556 = vmatmul.mubr.bf16.gmra.mrb[0].mxu0 %v521
        %v557 = vpop.f32.mrb[0].mxu0
        %v558 = vadd.f32 0.0, %v557
        %v559 = vpop.f32.mrb[0].mxu0
        %v560 = vpop.f32.mrb[0].mxu0
        %v561 = vpop.f32.mrb[0].mxu0
        %562 = vdwg.mxu0
        %v563 = vld [vmem:[#allocation11] sm:$0xf]
        %v564 = vld [vmem:[#allocation11 + $0x4] sm:$0xf]
        %v565 = vld [vmem:[#allocation11 + $0x8] sm:$0xf]
        %v566 = vld [vmem:[#allocation11 + $0xc] sm:$0xf]
        %v571 = vunpack.c.l.b16 %v563
        %v572 = vunpack.c.l.b16 %v564
        %v573 = vunpack.c.l.b16 %v565
        %v574 = vunpack.c.l.b16 %v566
        %v575 = vpack.c.b16 %v572, %v571
        %v576 = vpack.c.b16 %v574, %v573
        %579 = vmatprep.subr.bf16.mxu0 0
        %580 = vmatpush1.bf16.msra.mxu0 %v575
        %581 = vmatprep.subr.bf16.mxu0 0
        %582 = vmatpush1.bf16.msra.mxu0 %v576
        %583 = vmatprep.subr.bf16.mxu0 0
        %584 = vmatpush1.bf16.msra.mxu0 0
        %585 = vmatprep.subr.bf16.mxu0 0
        %586 = vmatpush1.bf16.msra.mxu0 0
        %587 = vmatprep.subr.bf16.mxu0 0
        %588 = vmatpush1.bf16.msra.mxu0 0
        %589 = vmatprep.subr.bf16.mxu0 0
        %590 = vmatpush1.bf16.msra.mxu0 0
        %591 = vmatprep.subr.bf16.mxu0 0
        %592 = vmatpush1.bf16.msra.mxu0 0
        %593 = vmatprep.subr.bf16.mxu0 0
        %594 = vmatpush1.bf16.msra.mxu0 0
        %595 = vmatprep.subr.bf16.mxu0 0
        %596 = vmatpush1.bf16.msra.mxu0 0
        %597 = vmatprep.subr.bf16.mxu0 0
        %598 = vmatpush1.bf16.msra.mxu0 0
        %599 = vmatprep.subr.bf16.mxu0 0
        %600 = vmatpush1.bf16.msra.mxu0 0
        %601 = vmatprep.subr.bf16.mxu0 0
        %602 = vmatpush1.bf16.msra.mxu0 0
        %603 = vmatprep.subr.bf16.mxu0 0
        %604 = vmatpush1.bf16.msra.mxu0 0
        %605 = vmatprep.subr.bf16.mxu0 0
        %606 = vmatpush1.bf16.msra.mxu0 0
        %607 = vmatprep.subr.bf16.mxu0 0
        %608 = vmatpush1.bf16.msra.mxu0 0
        %609 = vmatprep.subr.bf16.mxu0 0
        %610 = vmatpush1.bf16.msra.mxu0 0
        %611 = vmatprep.mubr.bf16.mxu0 0
        %612 = vmatmul.mubr.bf16.gmra.mrb[0].mxu0 %v521
        %v613 = vpop.f32.mrb[0].mxu0
        %v614 = vadd.f32 0.0, %v613
        %v615 = vpop.f32.mrb[0].mxu0
        %v616 = vpop.f32.mrb[0].mxu0
        %v617 = vpop.f32.mrb[0].mxu0
        %618 = vdwg.mxu0
        %v619 = vld [vmem:[#allocation12] sm:$0xf]
        %v620 = vld [vmem:[#allocation12 + $0x4] sm:$0xf]
        %v621 = vld [vmem:[#allocation12 + $0x8] sm:$0xf]
        %v622 = vld [vmem:[#allocation12 + $0xc] sm:$0xf]
        %v627 = vunpack.c.l.b16 %v619
        %v628 = vunpack.c.l.b16 %v620
        %v629 = vunpack.c.l.b16 %v621
        %v630 = vunpack.c.l.b16 %v622
        %v631 = vpack.c.b16 %v628, %v627
        %v632 = vpack.c.b16 %v630, %v629
        %635 = vmatprep.subr.bf16.mxu0 0
        %636 = vmatpush1.bf16.msra.mxu0 %v631
        %637 = vmatprep.subr.bf16.mxu0 0
        %638 = vmatpush1.bf16.msra.mxu0 %v632
        %639 = vmatprep.subr.bf16.mxu0 0
        %640 = vmatpush1.bf16.msra.mxu0 0
        %641 = vmatprep.subr.bf16.mxu0 0
        %642 = vmatpush1.bf16.msra.mxu0 0
        %643 = vmatprep.subr.bf16.mxu0 0
        %644 = vmatpush1.bf16.msra.mxu0 0
        %645 = vmatprep.subr.bf16.mxu0 0
        %646 = vmatpush1.bf16.msra.mxu0 0
        %647 = vmatprep.subr.bf16.mxu0 0
        %648 = vmatpush1.bf16.msra.mxu0 0
        %649 = vmatprep.subr.bf16.mxu0 0
        %650 = vmatpush1.bf16.msra.mxu0 0
        %651 = vmatprep.subr.bf16.mxu0 0
        %652 = vmatpush1.bf16.msra.mxu0 0
        %653 = vmatprep.subr.bf16.mxu0 0
        %654 = vmatpush1.bf16.msra.mxu0 0
        %655 = vmatprep.subr.bf16.mxu0 0
        %656 = vmatpush1.bf16.msra.mxu0 0
        %657 = vmatprep.subr.bf16.mxu0 0
        %658 = vmatpush1.bf16.msra.mxu0 0
        %659 = vmatprep.subr.bf16.mxu0 0
        %660 = vmatpush1.bf16.msra.mxu0 0
        %661 = vmatprep.subr.bf16.mxu0 0
        %662 = vmatpush1.bf16.msra.mxu0 0
        %663 = vmatprep.subr.bf16.mxu0 0
        %664 = vmatpush1.bf16.msra.mxu0 0
        %665 = vmatprep.subr.bf16.mxu0 0
        %666 = vmatpush1.bf16.msra.mxu0 0
        %667 = vmatprep.mubr.bf16.mxu0 0
        %668 = vmatmul.mubr.bf16.gmra.mrb[0].mxu0 %v521
        %v669 = vpop.f32.mrb[0].mxu0
        %v670 = vadd.f32 0.0, %v669
        %v671 = vpop.f32.mrb[0].mxu0
        %v672 = vpop.f32.mrb[0].mxu0
        %v673 = vpop.f32.mrb[0].mxu0
        %674 = vdwg.mxu0
        %v675 = vpack.c.bf16 %v558, %v558
        %v676 = vpack.c.bf16 %v614, %v614
        %vm677 = vcmask 64512
        %v679 = vsel %vm677, %v675, 0
        %v682 = vsel %vm677, %v676, 0
        %684 = vmatprep.subr.bf16.mxu0 0
        %685 = vmatpush1.bf16.xpose.msra.mxu0 %v682
        %686 = vmatprep.subr.bf16.mxu0 0
        %687 = vmatpush1.bf16.xpose.msra.mxu0 0
        %688 = vmatprep.subr.bf16.mxu0 0
        %689 = vmatpush1.bf16.xpose.msra.mxu0 0
        %690 = vmatprep.subr.bf16.mxu0 0
        %691 = vmatpush1.bf16.xpose.msra.mxu0 0
        %692 = vmatprep.subr.bf16.mxu0 0
        %693 = vmatpush1.bf16.xpose.msra.mxu0 0
        %694 = vmatprep.subr.bf16.mxu0 0
        %695 = vmatpush1.bf16.xpose.msra.mxu0 0
        %696 = vmatprep.subr.bf16.mxu0 0
        %697 = vmatpush1.bf16.xpose.msra.mxu0 0
        %698 = vmatprep.subr.bf16.mxu0 0
        %699 = vmatpush1.bf16.xpose.msra.mxu0 0
        %700 = vmatprep.subr.bf16.mxu0 0
        %701 = vmatpush1.bf16.xpose.msra.mxu0 0
        %702 = vmatprep.subr.bf16.mxu0 0
        %703 = vmatpush1.bf16.xpose.msra.mxu0 0
        %704 = vmatprep.subr.bf16.mxu0 0
        %705 = vmatpush1.bf16.xpose.msra.mxu0 0
        %706 = vmatprep.subr.bf16.mxu0 0
        %707 = vmatpush1.bf16.xpose.msra.mxu0 0
        %708 = vmatprep.subr.bf16.mxu0 0
        %709 = vmatpush1.bf16.xpose.msra.mxu0 0
        %710 = vmatprep.subr.bf16.mxu0 0
        %711 = vmatpush1.bf16.xpose.msra.mxu0 0
        %712 = vmatprep.subr.bf16.mxu0 0
        %713 = vmatpush1.bf16.xpose.msra.mxu0 0
        %714 = vmatprep.subr.bf16.mxu0 0
        %715 = vmatpush1.bf16.xpose.msra.mxu0 0
        %716 = vmatprep.mubr.bf16.mxu0 0
        %717 = vmatmul.mubr.bf16.gmra.mrb[0].mxu0 %v679
        %v718 = vpop.f32.mrb[0].mxu0
        %v719 = vadd.f32 0.0, %v718
        %v720 = vpop.f32.mrb[0].mxu0
        %v721 = vpop.f32.mrb[0].mxu0
        %v722 = vpop.f32.mrb[0].mxu0
        %723 = vdwg.mxu0
        %v724 = vmul.f32 %v719, 0.35355338
        %v725 = vld [vmem:[%s430] sm:$0xf]
        %v726 = vunpack.c.l.bf16 %v725
        %v727 = vadd.f32 %v724, %v726
        %vm728 = vcmp.gt.f32.partialorder %v502, 0.0
        %v729 = vsel %vm728, 1, 0
        %v730 = vlaneseq
        %v731 = vshrl.u32 %v730, 7
        %v732 = vsub.s32 0, %v731
        %v733 = vrot.slane %v729, %v732
        %vm734 = vcmp.eq.s32.totalorder %v733, 1
        %v735 = vsel %vm734, %v727, -9e+15
        %v736 = vsel %vm677, %v735, -inf
        %737 = vmax.xlane.f32.xlu0 %v736
        %v738 = vpop.xlane.xlu0 %737
        %v739 = vsub.f32 %v735, %v738
        %v740 = vmul.f32 %v739, 1.442695
        %v741 = vpow.pop %v740
        %v742 = vsel %vm677, %v741, 0.0
        %743 = vadd.xlane.f32.xlu0 %v742
        %v744 = vpop.xlane.xlu0 %743
        %v745 = vrcp.pop %v744
        %v746 = vmul.f32 %v741, %v745
        %747 = vst.msk [vmem:[%s491] sm:$0xff] %vm677, %v746
        %v748 = vpack.c.bf16 %v746, %v746
        %v749 = vpack.c.bf16 %v670, %v670
        %v751 = vsel %vm677, %v748, 0
        %vm753 = vcmask 1043456
        %v755 = vsel %vm753, %v749, 0
        %757 = vmatprep.subr.bf16.mxu0 0
        %758 = vmatpush1.bf16.msra.mxu0 %v755
        %759 = vmatprep.subr.bf16.mxu0 0
        %760 = vmatpush1.bf16.msra.mxu0 0
        %761 = vmatprep.subr.bf16.mxu0 0
        %762 = vmatpush1.bf16.msra.mxu0 0
        %763 = vmatprep.subr.bf16.mxu0 0
        %764 = vmatpush1.bf16.msra.mxu0 0
        %765 = vmatprep.subr.bf16.mxu0 0
        %766 = vmatpush1.bf16.msra.mxu0 0
        %767 = vmatprep.subr.bf16.mxu0 0
        %768 = vmatpush1.bf16.msra.mxu0 0
        %769 = vmatprep.subr.bf16.mxu0 0
        %770 = vmatpush1.bf16.msra.mxu0 0
        %771 = vmatprep.subr.bf16.mxu0 0
        %772 = vmatpush1.bf16.msra.mxu0 0
        %773 = vmatprep.subr.bf16.mxu0 0
        %774 = vmatpush1.bf16.msra.mxu0 0
        %775 = vmatprep.subr.bf16.mxu0 0
        %776 = vmatpush1.bf16.msra.mxu0 0
        %777 = vmatprep.subr.bf16.mxu0 0
        %778 = vmatpush1.bf16.msra.mxu0 0
        %779 = vmatprep.subr.bf16.mxu0 0
        %780 = vmatpush1.bf16.msra.mxu0 0
        %781 = vmatprep.subr.bf16.mxu0 0
        %782 = vmatpush1.bf16.msra.mxu0 0
        %783 = vmatprep.subr.bf16.mxu0 0
        %784 = vmatpush1.bf16.msra.mxu0 0
        %785 = vmatprep.subr.bf16.mxu0 0
        %786 = vmatpush1.bf16.msra.mxu0 0
        %787 = vmatprep.subr.bf16.mxu0 0
        %788 = vmatpush1.bf16.msra.mxu0 0
        %789 = vmatprep.mubr.bf16.mxu0 0
        %790 = vmatmul.mubr.bf16.gmra.mrb[0].mxu0 %v751
        %v791 = vpop.f32.mrb[0].mxu0
        %v792 = vadd.f32 0.0, %v791
        %v793 = vpop.f32.mrb[0].mxu0
        %v794 = vpop.f32.mrb[0].mxu0
        %v795 = vpop.f32.mrb[0].mxu0
        %796 = vdwg.mxu0
        %797 = vst.msk [vmem:[#allocation2] sm:$0xff] %vm677, %v792
        %s798 = scalar_lea.vmem [#allocation9], 16
        %v799 = vld [vmem:[%s798] sm:$0xf]
        %v800 = vld [vmem:[%s798 + $0x4] sm:$0xf]
        %v801 = vld [vmem:[%s798 + $0x8] sm:$0xf]
        %v802 = vld [vmem:[%s798 + $0xc] sm:$0xf]
        %v807 = vunpack.c.l.b16 %v799
        %v808 = vunpack.c.l.b16 %v800
        %v809 = vunpack.c.l.b16 %v801
        %v810 = vunpack.c.l.b16 %v802
        %v811 = vpack.c.b16 %v808, %v807
        %v812 = vpack.c.b16 %v810, %v809
        %815 = vmatprep.subr.bf16.mxu0 0
        %816 = vmatpush1.bf16.msra.mxu0 %v811
        %817 = vmatprep.subr.bf16.mxu0 0
        %818 = vmatpush1.bf16.msra.mxu0 %v812
        %819 = vmatprep.subr.bf16.mxu0 0
        %820 = vmatpush1.bf16.msra.mxu0 0
        %821 = vmatprep.subr.bf16.mxu0 0
        %822 = vmatpush1.bf16.msra.mxu0 0
        %823 = vmatprep.subr.bf16.mxu0 0
        %824 = vmatpush1.bf16.msra.mxu0 0
        %825 = vmatprep.subr.bf16.mxu0 0
        %826 = vmatpush1.bf16.msra.mxu0 0
        %827 = vmatprep.subr.bf16.mxu0 0
        %828 = vmatpush1.bf16.msra.mxu0 0
        %829 = vmatprep.subr.bf16.mxu0 0
        %830 = vmatpush1.bf16.msra.mxu0 0
        %831 = vmatprep.subr.bf16.mxu0 0
        %832 = vmatpush1.bf16.msra.mxu0 0
        %833 = vmatprep.subr.bf16.mxu0 0
        %834 = vmatpush1.bf16.msra.mxu0 0
        %835 = vmatprep.subr.bf16.mxu0 0
        %836 = vmatpush1.bf16.msra.mxu0 0
        %837 = vmatprep.subr.bf16.mxu0 0
        %838 = vmatpush1.bf16.msra.mxu0 0
        %839 = vmatprep.subr.bf16.mxu0 0
        %840 = vmatpush1.bf16.msra.mxu0 0
        %841 = vmatprep.subr.bf16.mxu0 0
        %842 = vmatpush1.bf16.msra.mxu0 0
        %843 = vmatprep.subr.bf16.mxu0 0
        %844 = vmatpush1.bf16.msra.mxu0 0
        %845 = vmatprep.subr.bf16.mxu0 0
        %846 = vmatpush1.bf16.msra.mxu0 0
        %847 = vmatprep.mubr.bf16.mxu0 0
        %848 = vmatmul.mubr.bf16.gmra.mrb[0].mxu0 %v521
        %v849 = vpop.f32.mrb[0].mxu0
        %v850 = vadd.f32 0.0, %v849
        %v851 = vpop.f32.mrb[0].mxu0
        %v852 = vpop.f32.mrb[0].mxu0
        %v853 = vpop.f32.mrb[0].mxu0
        %854 = vdwg.mxu0
        %s855 = scalar_lea.vmem [#allocation11], 16
        %v856 = vld [vmem:[%s855] sm:$0xf]
        %v857 = vld [vmem:[%s855 + $0x4] sm:$0xf]
        %v858 = vld [vmem:[%s855 + $0x8] sm:$0xf]
        %v859 = vld [vmem:[%s855 + $0xc] sm:$0xf]
        %v864 = vunpack.c.l.b16 %v856
        %v865 = vunpack.c.l.b16 %v857
        %v866 = vunpack.c.l.b16 %v858
        %v867 = vunpack.c.l.b16 %v859
        %v868 = vpack.c.b16 %v865, %v864
        %v869 = vpack.c.b16 %v867, %v866
        %872 = vmatprep.subr.bf16.mxu0 0
        %873 = vmatpush1.bf16.msra.mxu0 %v868
        %874 = vmatprep.subr.bf16.mxu0 0
        %875 = vmatpush1.bf16.msra.mxu0 %v869
        %876 = vmatprep.subr.bf16.mxu0 0
        %877 = vmatpush1.bf16.msra.mxu0 0
        %878 = vmatprep.subr.bf16.mxu0 0
        %879 = vmatpush1.bf16.msra.mxu0 0
        %880 = vmatprep.subr.bf16.mxu0 0
        %881 = vmatpush1.bf16.msra.mxu0 0
        %882 = vmatprep.subr.bf16.mxu0 0
        %883 = vmatpush1.bf16.msra.mxu0 0
        %884 = vmatprep.subr.bf16.mxu0 0
        %885 = vmatpush1.bf16.msra.mxu0 0
        %886 = vmatprep.subr.bf16.mxu0 0
        %887 = vmatpush1.bf16.msra.mxu0 0
        %888 = vmatprep.subr.bf16.mxu0 0
        %889 = vmatpush1.bf16.msra.mxu0 0
        %890 = vmatprep.subr.bf16.mxu0 0
        %891 = vmatpush1.bf16.msra.mxu0 0
        %892 = vmatprep.subr.bf16.mxu0 0
        %893 = vmatpush1.bf16.msra.mxu0 0
        %894 = vmatprep.subr.bf16.mxu0 0
        %895 = vmatpush1.bf16.msra.mxu0 0
        %896 = vmatprep.subr.bf16.mxu0 0
        %897 = vmatpush1.bf16.msra.mxu0 0
        %898 = vmatprep.subr.bf16.mxu0 0
        %899 = vmatpush1.bf16.msra.mxu0 0
        %900 = vmatprep.subr.bf16.mxu0 0
        %901 = vmatpush1.bf16.msra.mxu0 0
        %902 = vmatprep.subr.bf16.mxu0 0
        %903 = vmatpush1.bf16.msra.mxu0 0
        %904 = vmatprep.mubr.bf16.mxu0 0
        %905 = vmatmul.mubr.bf16.gmra.mrb[0].mxu0 %v521
        %v906 = vpop.f32.mrb[0].mxu0
        %v907 = vadd.f32 0.0, %v906
        %v908 = vpop.f32.mrb[0].mxu0
        %v909 = vpop.f32.mrb[0].mxu0
        %v910 = vpop.f32.mrb[0].mxu0
        %911 = vdwg.mxu0
        %s912 = scalar_lea.vmem [#allocation12], 16
        %v913 = vld [vmem:[%s912] sm:$0xf]
        %v914 = vld [vmem:[%s912 + $0x4] sm:$0xf]
        %v915 = vld [vmem:[%s912 + $0x8] sm:$0xf]
        %v916 = vld [vmem:[%s912 + $0xc] sm:$0xf]
        %v921 = vunpack.c.l.b16 %v913
        %v922 = vunpack.c.l.b16 %v914
        %v923 = vunpack.c.l.b16 %v915
        %v924 = vunpack.c.l.b16 %v916
        %v925 = vpack.c.b16 %v922, %v921
        %v926 = vpack.c.b16 %v924, %v923
        %929 = vmatprep.subr.bf16.mxu0 0
        %930 = vmatpush1.bf16.msra.mxu0 %v925
        %931 = vmatprep.subr.bf16.mxu0 0
        %932 = vmatpush1.bf16.msra.mxu0 %v926
        %933 = vmatprep.subr.bf16.mxu0 0
        %934 = vmatpush1.bf16.msra.mxu0 0
        %935 = vmatprep.subr.bf16.mxu0 0
        %936 = vmatpush1.bf16.msra.mxu0 0
        %937 = vmatprep.subr.bf16.mxu0 0
        %938 = vmatpush1.bf16.msra.mxu0 0
        %939 = vmatprep.subr.bf16.mxu0 0
        %940 = vmatpush1.bf16.msra.mxu0 0
        %941 = vmatprep.subr.bf16.mxu0 0
        %942 = vmatpush1.bf16.msra.mxu0 0
        %943 = vmatprep.subr.bf16.mxu0 0
        %944 = vmatpush1.bf16.msra.mxu0 0
        %945 = vmatprep.subr.bf16.mxu0 0
        %946 = vmatpush1.bf16.msra.mxu0 0
        %947 = vmatprep.subr.bf16.mxu0 0
        %948 = vmatpush1.bf16.msra.mxu0 0
        %949 = vmatprep.subr.bf16.mxu0 0
        %950 = vmatpush1.bf16.msra.mxu0 0
        %951 = vmatprep.subr.bf16.mxu0 0
        %952 = vmatpush1.bf16.msra.mxu0 0
        %953 = vmatprep.subr.bf16.mxu0 0
        %954 = vmatpush1.bf16.msra.mxu0 0
        %955 = vmatprep.subr.bf16.mxu0 0
        %956 = vmatpush1.bf16.msra.mxu0 0
        %957 = vmatprep.subr.bf16.mxu0 0
        %958 = vmatpush1.bf16.msra.mxu0 0
        %959 = vmatprep.subr.bf16.mxu0 0
        %960 = vmatpush1.bf16.msra.mxu0 0
        %961 = vmatprep.mubr.bf16.mxu0 0
        %962 = vmatmul.mubr.bf16.gmra.mrb[0].mxu0 %v521
        %v963 = vpop.f32.mrb[0].mxu0
        %v964 = vadd.f32 0.0, %v963
        %v965 = vpop.f32.mrb[0].mxu0
        %v966 = vpop.f32.mrb[0].mxu0
        %v967 = vpop.f32.mrb[0].mxu0
        %968 = vdwg.mxu0
        %v969 = vpack.c.bf16 %v850, %v850
        %v970 = vpack.c.bf16 %v907, %v907
        %v972 = vsel %vm677, %v969, 0
        %v975 = vsel %vm677, %v970, 0
        %977 = vmatprep.subr.bf16.mxu0 0
        %978 = vmatpush1.bf16.xpose.msra.mxu0 %v975
        %979 = vmatprep.subr.bf16.mxu0 0
        %980 = vmatpush1.bf16.xpose.msra.mxu0 0
        %981 = vmatprep.subr.bf16.mxu0 0
        %982 = vmatpush1.bf16.xpose.msra.mxu0 0
        %983 = vmatprep.subr.bf16.mxu0 0
        %984 = vmatpush1.bf16.xpose.msra.mxu0 0
        %985 = vmatprep.subr.bf16.mxu0 0
        %986 = vmatpush1.bf16.xpose.msra.mxu0 0
        %987 = vmatprep.subr.bf16.mxu0 0
        %988 = vmatpush1.bf16.xpose.msra.mxu0 0
        %989 = vmatprep.subr.bf16.mxu0 0
        %990 = vmatpush1.bf16.xpose.msra.mxu0 0
        %991 = vmatprep.subr.bf16.mxu0 0
        %992 = vmatpush1.bf16.xpose.msra.mxu0 0
        %993 = vmatprep.subr.bf16.mxu0 0
        %994 = vmatpush1.bf16.xpose.msra.mxu0 0
        %995 = vmatprep.subr.bf16.mxu0 0
        %996 = vmatpush1.bf16.xpose.msra.mxu0 0
        %997 = vmatprep.subr.bf16.mxu0 0
        %998 = vmatpush1.bf16.xpose.msra.mxu0 0
        %999 = vmatprep.subr.bf16.mxu0 0
        %1000 = vmatpush1.bf16.xpose.msra.mxu0 0
        %1001 = vmatprep.subr.bf16.mxu0 0
        %1002 = vmatpush1.bf16.xpose.msra.mxu0 0
        %1003 = vmatprep.subr.bf16.mxu0 0
        %1004 = vmatpush1.bf16.xpose.msra.mxu0 0
        %1005 = vmatprep.subr.bf16.mxu0 0
        %1006 = vmatpush1.bf16.xpose.msra.mxu0 0
        %1007 = vmatprep.subr.bf16.mxu0 0
        %1008 = vmatpush1.bf16.xpose.msra.mxu0 0
        %1009 = vmatprep.mubr.bf16.mxu0 0
        %1010 = vmatmul.mubr.bf16.gmra.mrb[0].mxu0 %v972
        %v1011 = vpop.f32.mrb[0].mxu0
        %v1012 = vadd.f32 0.0, %v1011
        %v1013 = vpop.f32.mrb[0].mxu0
        %v1014 = vpop.f32.mrb[0].mxu0
        %v1015 = vpop.f32.mrb[0].mxu0
        %1016 = vdwg.mxu0
        %v1017 = vmul.f32 %v1012, 0.35355338
        %s1018 = scalar_lea.vmem %s430, 4 [#allocation8]
        %v1019 = vld [vmem:[%s1018] sm:$0xf]
        %v1020 = vunpack.c.l.bf16 %v1019
        %v1021 = vadd.f32 %v1017, %v1020
        %v1022 = vsel %vm734, %v1021, -9e+15
        %v1023 = vsel %vm677, %v1022, -inf
        %1024 = vmax.xlane.f32.xlu0 %v1023
        %v1025 = vpop.xlane.xlu0 %1024
        %v1026 = vsub.f32 %v1022, %v1025
        %v1027 = vmul.f32 %v1026, 1.442695
        %v1028 = vpow.pop %v1027
        %v1029 = vsel %vm677, %v1028, 0.0
        %1030 = vadd.xlane.f32.xlu0 %v1029
        %v1031 = vpop.xlane.xlu0 %1030
        %v1032 = vrcp.pop %v1031
        %v1033 = vmul.f32 %v1028, %v1032
        %s1034 = scalar_lea.vmem %s491, 8 [#allocation17]
        %1035 = vst.msk [vmem:[%s1034] sm:$0xff] %vm677, %v1033
        %v1036 = vpack.c.bf16 %v1033, %v1033
        %v1037 = vpack.c.bf16 %v964, %v964
        %v1039 = vsel %vm677, %v1036, 0
        %v1042 = vsel %vm753, %v1037, 0
        %1044 = vmatprep.subr.bf16.mxu0 0
        %1045 = vmatpush1.bf16.msra.mxu0 %v1042
        %1046 = vmatprep.subr.bf16.mxu0 0
        %1047 = vmatpush1.bf16.msra.mxu0 0
        %1048 = vmatprep.subr.bf16.mxu0 0
        %1049 = vmatpush1.bf16.msra.mxu0 0
        %1050 = vmatprep.subr.bf16.mxu0 0
        %1051 = vmatpush1.bf16.msra.mxu0 0
        %1052 = vmatprep.subr.bf16.mxu0 0
        %1053 = vmatpush1.bf16.msra.mxu0 0
        %1054 = vmatprep.subr.bf16.mxu0 0
        %1055 = vmatpush1.bf16.msra.mxu0 0
        %1056 = vmatprep.subr.bf16.mxu0 0
        %1057 = vmatpush1.bf16.msra.mxu0 0
        %1058 = vmatprep.subr.bf16.mxu0 0
        %1059 = vmatpush1.bf16.msra.mxu0 0
        %1060 = vmatprep.subr.bf16.mxu0 0
        %1061 = vmatpush1.bf16.msra.mxu0 0
        %1062 = vmatprep.subr.bf16.mxu0 0
        %1063 = vmatpush1.bf16.msra.mxu0 0
        %1064 = vmatprep.subr.bf16.mxu0 0
        %1065 = vmatpush1.bf16.msra.mxu0 0
        %1066 = vmatprep.subr.bf16.mxu0 0
        %1067 = vmatpush1.bf16.msra.mxu0 0
        %1068 = vmatprep.subr.bf16.mxu0 0
        %1069 = vmatpush1.bf16.msra.mxu0 0
        %1070 = vmatprep.subr.bf16.mxu0 0
        %1071 = vmatpush1.bf16.msra.mxu0 0
        %1072 = vmatprep.subr.bf16.mxu0 0
        %1073 = vmatpush1.bf16.msra.mxu0 0
        %1074 = vmatprep.subr.bf16.mxu0 0
        %1075 = vmatpush1.bf16.msra.mxu0 0
        %1076 = vmatprep.mubr.bf16.mxu0 0
        %1077 = vmatmul.mubr.bf16.gmra.mrb[0].mxu0 %v1039
        %v1078 = vpop.f32.mrb[0].mxu0
        %v1079 = vadd.f32 0.0, %v1078
        %v1080 = vpop.f32.mrb[0].mxu0
        %v1081 = vpop.f32.mrb[0].mxu0
        %v1082 = vpop.f32.mrb[0].mxu0
        %1083 = vdwg.mxu0
        %1085 = vrot.lane.b32.xlu0 %v1079, 8
        %v1086 = vpop.permute.xlu0 %1085
        %vm1088 = vcmask 130112
        %1089 = vst.msk [vmem:[#allocation2] sm:$0xff] %vm1088, %v1086
        %s1090 = scalar_lea.vmem [#allocation9], 32
        %v1091 = vld [vmem:[%s1090] sm:$0xf]
        %v1092 = vld [vmem:[%s1090 + $0x4] sm:$0xf]
        %v1093 = vld [vmem:[%s1090 + $0x8] sm:$0xf]
        %v1094 = vld [vmem:[%s1090 + $0xc] sm:$0xf]
        %v1099 = vunpack.c.l.b16 %v1091
        %v1100 = vunpack.c.l.b16 %v1092
        %v1101 = vunpack.c.l.b16 %v1093
        %v1102 = vunpack.c.l.b16 %v1094
        %v1103 = vpack.c.b16 %v1100, %v1099
        %v1104 = vpack.c.b16 %v1102, %v1101
        %1107 = vmatprep.subr.bf16.mxu0 0
        %1108 = vmatpush1.bf16.msra.mxu0 %v1103
        %1109 = vmatprep.subr.bf16.mxu0 0
        %1110 = vmatpush1.bf16.msra.mxu0 %v1104
        %1111 = vmatprep.subr.bf16.mxu0 0
        %1112 = vmatpush1.bf16.msra.mxu0 0
        %1113 = vmatprep.subr.bf16.mxu0 0
        %1114 = vmatpush1.bf16.msra.mxu0 0
        %1115 = vmatprep.subr.bf16.mxu0 0
        %1116 = vmatpush1.bf16.msra.mxu0 0
        %1117 = vmatprep.subr.bf16.mxu0 0
        %1118 = vmatpush1.bf16.msra.mxu0 0
        %1119 = vmatprep.subr.bf16.mxu0 0
        %1120 = vmatpush1.bf16.msra.mxu0 0
        %1121 = vmatprep.subr.bf16.mxu0 0
        %1122 = vmatpush1.bf16.msra.mxu0 0
        %1123 = vmatprep.subr.bf16.mxu0 0
        %1124 = vmatpush1.bf16.msra.mxu0 0
        %1125 = vmatprep.subr.bf16.mxu0 0
        %1126 = vmatpush1.bf16.msra.mxu0 0
        %1127 = vmatprep.subr.bf16.mxu0 0
        %1128 = vmatpush1.bf16.msra.mxu0 0
        %1129 = vmatprep.subr.bf16.mxu0 0
        %1130 = vmatpush1.bf16.msra.mxu0 0
        %1131 = vmatprep.subr.bf16.mxu0 0
        %1132 = vmatpush1.bf16.msra.mxu0 0
        %1133 = vmatprep.subr.bf16.mxu0 0
        %1134 = vmatpush1.bf16.msra.mxu0 0
        %1135 = vmatprep.subr.bf16.mxu0 0
        %1136 = vmatpush1.bf16.msra.mxu0 0
        %1137 = vmatprep.subr.bf16.mxu0 0
        %1138 = vmatpush1.bf16.msra.mxu0 0
        %1139 = vmatprep.mubr.bf16.mxu0 0
        %1140 = vmatmul.mubr.bf16.gmra.mrb[0].mxu0 %v521
        %v1141 = vpop.f32.mrb[0].mxu0
        %v1142 = vadd.f32 0.0, %v1141
        %v1143 = vpop.f32.mrb[0].mxu0
        %v1144 = vpop.f32.mrb[0].mxu0
        %v1145 = vpop.f32.mrb[0].mxu0
        %1146 = vdwg.mxu0
        %s1147 = scalar_lea.vmem [#allocation11], 32
        %v1148 = vld [vmem:[%s1147] sm:$0xf]
        %v1149 = vld [vmem:[%s1147 + $0x4] sm:$0xf]
        %v1150 = vld [vmem:[%s1147 + $0x8] sm:$0xf]
        %v1151 = vld [vmem:[%s1147 + $0xc] sm:$0xf]
        %v1156 = vunpack.c.l.b16 %v1148
        %v1157 = vunpack.c.l.b16 %v1149
        %v1158 = vunpack.c.l.b16 %v1150
        %v1159 = vunpack.c.l.b16 %v1151
        %v1160 = vpack.c.b16 %v1157, %v1156
        %v1161 = vpack.c.b16 %v1159, %v1158
        %1164 = vmatprep.subr.bf16.mxu0 0
        %1165 = vmatpush1.bf16.msra.mxu0 %v1160
        %1166 = vmatprep.subr.bf16.mxu0 0
        %1167 = vmatpush1.bf16.msra.mxu0 %v1161
        %1168 = vmatprep.subr.bf16.mxu0 0
        %1169 = vmatpush1.bf16.msra.mxu0 0
        %1170 = vmatprep.subr.bf16.mxu0 0
        %1171 = vmatpush1.bf16.msra.mxu0 0
        %1172 = vmatprep.subr.bf16.mxu0 0
        %1173 = vmatpush1.bf16.msra.mxu0 0
        %1174 = vmatprep.subr.bf16.mxu0 0
        %1175 = vmatpush1.bf16.msra.mxu0 0
        %1176 = vmatprep.subr.bf16.mxu0 0
        %1177 = vmatpush1.bf16.msra.mxu0 0
        %1178 = vmatprep.subr.bf16.mxu0 0
        %1179 = vmatpush1.bf16.msra.mxu0 0
        %1180 = vmatprep.subr.bf16.mxu0 0
        %1181 = vmatpush1.bf16.msra.mxu0 0
        %1182 = vmatprep.subr.bf16.mxu0 0
        %1183 = vmatpush1.bf16.msra.mxu0 0
        %1184 = vmatprep.subr.bf16.mxu0 0
        %1185 = vmatpush1.bf16.msra.mxu0 0
        %1186 = vmatprep.subr.bf16.mxu0 0
        %1187 = vmatpush1.bf16.msra.mxu0 0
        %1188 = vmatprep.subr.bf16.mxu0 0
        %1189 = vmatpush1.bf16.msra.mxu0 0
        %1190 = vmatprep.subr.bf16.mxu0 0
        %1191 = vmatpush1.bf16.msra.mxu0 0
        %1192 = vmatprep.subr.bf16.mxu0 0
        %1193 = vmatpush1.bf16.msra.mxu0 0
        %1194 = vmatprep.subr.bf16.mxu0 0
        %1195 = vmatpush1.bf16.msra.mxu0 0
        %1196 = vmatprep.mubr.bf16.mxu0 0
        %1197 = vmatmul.mubr.bf16.gmra.mrb[0].mxu0 %v521
        %v1198 = vpop.f32.mrb[0].mxu0
        %v1199 = vadd.f32 0.0, %v1198
        %v1200 = vpop.f32.mrb[0].mxu0
        %v1201 = vpop.f32.mrb[0].mxu0
        %v1202 = vpop.f32.mrb[0].mxu0
        %1203 = vdwg.mxu0
        %s1204 = scalar_lea.vmem [#allocation12], 32
        %v1205 = vld [vmem:[%s1204] sm:$0xf]
        %v1206 = vld [vmem:[%s1204 + $0x4] sm:$0xf]
        %v1207 = vld [vmem:[%s1204 + $0x8] sm:$0xf]
        %v1208 = vld [vmem:[%s1204 + $0xc] sm:$0xf]
        %v1213 = vunpack.c.l.b16 %v1205
        %v1214 = vunpack.c.l.b16 %v1206
        %v1215 = vunpack.c.l.b16 %v1207
        %v1216 = vunpack.c.l.b16 %v1208
        %v1217 = vpack.c.b16 %v1214, %v1213
        %v1218 = vpack.c.b16 %v1216, %v1215
        %1221 = vmatprep.subr.bf16.mxu0 0
        %1222 = vmatpush1.bf16.msra.mxu0 %v1217
        %1223 = vmatprep.subr.bf16.mxu0 0
        %1224 = vmatpush1.bf16.msra.mxu0 %v1218
        %1225 = vmatprep.subr.bf16.mxu0 0
        %1226 = vmatpush1.bf16.msra.mxu0 0
        %1227 = vmatprep.subr.bf16.mxu0 0
        %1228 = vmatpush1.bf16.msra.mxu0 0
        %1229 = vmatprep.subr.bf16.mxu0 0
        %1230 = vmatpush1.bf16.msra.mxu0 0
        %1231 = vmatprep.subr.bf16.mxu0 0
        %1232 = vmatpush1.bf16.msra.mxu0 0
        %1233 = vmatprep.subr.bf16.mxu0 0
        %1234 = vmatpush1.bf16.msra.mxu0 0
        %1235 = vmatprep.subr.bf16.mxu0 0
        %1236 = vmatpush1.bf16.msra.mxu0 0
        %1237 = vmatprep.subr.bf16.mxu0 0
        %1238 = vmatpush1.bf16.msra.mxu0 0
        %1239 = vmatprep.subr.bf16.mxu0 0
        %1240 = vmatpush1.bf16.msra.mxu0 0
        %1241 = vmatprep.subr.bf16.mxu0 0
        %1242 = vmatpush1.bf16.msra.mxu0 0
        %1243 = vmatprep.subr.bf16.mxu0 0
        %1244 = vmatpush1.bf16.msra.mxu0 0
        %1245 = vmatprep.subr.bf16.mxu0 0
        %1246 = vmatpush1.bf16.msra.mxu0 0
        %1247 = vmatprep.subr.bf16.mxu0 0
        %1248 = vmatpush1.bf16.msra.mxu0 0
        %1249 = vmatprep.subr.bf16.mxu0 0
        %1250 = vmatpush1.bf16.msra.mxu0 0
        %1251 = vmatprep.subr.bf16.mxu0 0
        %1252 = vmatpush1.bf16.msra.mxu0 0
        %1253 = vmatprep.mubr.bf16.mxu0 0
        %1254 = vmatmul.mubr.bf16.gmra.mrb[0].mxu0 %v521
        %v1255 = vpop.f32.mrb[0].mxu0
        %v1256 = vadd.f32 0.0, %v1255
        %v1257 = vpop.f32.mrb[0].mxu0
        %v1258 = vpop.f32.mrb[0].mxu0
        %v1259 = vpop.f32.mrb[0].mxu0
        %1260 = vdwg.mxu0
        %v1261 = vpack.c.bf16 %v1142, %v1142
        %v1262 = vpack.c.bf16 %v1199, %v1199
        %v1264 = vsel %vm677, %v1261, 0
        %v1267 = vsel %vm677, %v1262, 0
        %1269 = vmatprep.subr.bf16.mxu0 0
        %1270 = vmatpush1.bf16.xpose.msra.mxu0 %v1267
        %1271 = vmatprep.subr.bf16.mxu0 0
        %1272 = vmatpush1.bf16.xpose.msra.mxu0 0
        %1273 = vmatprep.subr.bf16.mxu0 0
        %1274 = vmatpush1.bf16.xpose.msra.mxu0 0
        %1275 = vmatprep.subr.bf16.mxu0 0
        %1276 = vmatpush1.bf16.xpose.msra.mxu0 0
        %1277 = vmatprep.subr.bf16.mxu0 0
        %1278 = vmatpush1.bf16.xpose.msra.mxu0 0
        %1279 = vmatprep.subr.bf16.mxu0 0
        %1280 = vmatpush1.bf16.xpose.msra.mxu0 0
        %1281 = vmatprep.subr.bf16.mxu0 0
        %1282 = vmatpush1.bf16.xpose.msra.mxu0 0
        %1283 = vmatprep.subr.bf16.mxu0 0
        %1284 = vmatpush1.bf16.xpose.msra.mxu0 0
        %1285 = vmatprep.subr.bf16.mxu0 0
        %1286 = vmatpush1.bf16.xpose.msra.mxu0 0
        %1287 = vmatprep.subr.bf16.mxu0 0
        %1288 = vmatpush1.bf16.xpose.msra.mxu0 0
        %1289 = vmatprep.subr.bf16.mxu0 0
        %1290 = vmatpush1.bf16.xpose.msra.mxu0 0
        %1291 = vmatprep.subr.bf16.mxu0 0
        %1292 = vmatpush1.bf16.xpose.msra.mxu0 0
        %1293 = vmatprep.subr.bf16.mxu0 0
        %1294 = vmatpush1.bf16.xpose.msra.mxu0 0
        %1295 = vmatprep.subr.bf16.mxu0 0
        %1296 = vmatpush1.bf16.xpose.msra.mxu0 0
        %1297 = vmatprep.subr.bf16.mxu0 0
        %1298 = vmatpush1.bf16.xpose.msra.mxu0 0
        %1299 = vmatprep.subr.bf16.mxu0 0
        %1300 = vmatpush1.bf16.xpose.msra.mxu0 0
        %1301 = vmatprep.mubr.bf16.mxu0 0
        %1302 = vmatmul.mubr.bf16.gmra.mrb[0].mxu0 %v1264
        %v1303 = vpop.f32.mrb[0].mxu0
        %v1304 = vadd.f32 0.0, %v1303
        %v1305 = vpop.f32.mrb[0].mxu0
        %v1306 = vpop.f32.mrb[0].mxu0
        %v1307 = vpop.f32.mrb[0].mxu0
        %1308 = vdwg.mxu0
        %v1309 = vmul.f32 %v1304, 0.35355338
        %s1310 = scalar_lea.vmem %s430, 8 [#allocation8]
        %v1311 = vld [vmem:[%s1310] sm:$0xf]
        %v1312 = vunpack.c.l.bf16 %v1311
        %v1313 = vadd.f32 %v1309, %v1312
        %v1314 = vsel %vm734, %v1313, -9e+15
        %v1315 = vsel %vm677, %v1314, -inf
        %1316 = vmax.xlane.f32.xlu0 %v1315
        %v1317 = vpop.xlane.xlu0 %1316
        %v1318 = vsub.f32 %v1314, %v1317
        %v1319 = vmul.f32 %v1318, 1.442695
        %v1320 = vpow.pop %v1319
        %v1321 = vsel %vm677, %v1320, 0.0
        %1322 = vadd.xlane.f32.xlu0 %v1321
        %v1323 = vpop.xlane.xlu0 %1322
        %v1324 = vrcp.pop %v1323
        %v1325 = vmul.f32 %v1320, %v1324
        %s1326 = scalar_lea.vmem %s491, 16 [#allocation17]
        %1327 = vst.msk [vmem:[%s1326] sm:$0xff] %vm677, %v1325
        %v1328 = vpack.c.bf16 %v1325, %v1325
        %v1329 = vpack.c.bf16 %v1256, %v1256
        %v1331 = vsel %vm677, %v1328, 0
        %v1334 = vsel %vm753, %v1329, 0
        %1336 = vmatprep.subr.bf16.mxu0 0
        %1337 = vmatpush1.bf16.msra.mxu0 %v1334
        %1338 = vmatprep.subr.bf16.mxu0 0
        %1339 = vmatpush1.bf16.msra.mxu0 0
        %1340 = vmatprep.subr.bf16.mxu0 0
        %1341 = vmatpush1.bf16.msra.mxu0 0
        %1342 = vmatprep.subr.bf16.mxu0 0
        %1343 = vmatpush1.bf16.msra.mxu0 0
        %1344 = vmatprep.subr.bf16.mxu0 0
        %1345 = vmatpush1.bf16.msra.mxu0 0
        %1346 = vmatprep.subr.bf16.mxu0 0
        %1347 = vmatpush1.bf16.msra.mxu0 0
        %1348 = vmatprep.subr.bf16.mxu0 0
        %1349 = vmatpush1.bf16.msra.mxu0 0
        %1350 = vmatprep.subr.bf16.mxu0 0
        %1351 = vmatpush1.bf16.msra.mxu0 0
        %1352 = vmatprep.subr.bf16.mxu0 0
        %1353 = vmatpush1.bf16.msra.mxu0 0
        %1354 = vmatprep.subr.bf16.mxu0 0
        %1355 = vmatpush1.bf16.msra.mxu0 0
        %1356 = vmatprep.subr.bf16.mxu0 0
        %1357 = vmatpush1.bf16.msra.mxu0 0
        %1358 = vmatprep.subr.bf16.mxu0 0
        %1359 = vmatpush1.bf16.msra.mxu0 0
        %1360 = vmatprep.subr.bf16.mxu0 0
        %1361 = vmatpush1.bf16.msra.mxu0 0
        %1362 = vmatprep.subr.bf16.mxu0 0
        %1363 = vmatpush1.bf16.msra.mxu0 0
        %1364 = vmatprep.subr.bf16.mxu0 0
        %1365 = vmatpush1.bf16.msra.mxu0 0
        %1366 = vmatprep.subr.bf16.mxu0 0
        %1367 = vmatpush1.bf16.msra.mxu0 0
        %1368 = vmatprep.mubr.bf16.mxu0 0
        %1369 = vmatmul.mubr.bf16.gmra.mrb[0].mxu0 %v1331
        %v1370 = vpop.f32.mrb[0].mxu0
        %v1371 = vadd.f32 0.0, %v1370
        %v1372 = vpop.f32.mrb[0].mxu0
        %v1373 = vpop.f32.mrb[0].mxu0
        %v1374 = vpop.f32.mrb[0].mxu0
        %1375 = vdwg.mxu0
        %1377 = vrot.lane.b32.xlu0 %v1371, 16
        %v1378 = vpop.permute.xlu0 %1377
        %vm1380 = vcmask 195712
        %1381 = vst.msk [vmem:[#allocation2] sm:$0xff] %vm1380, %v1378
        %s1382 = scalar_lea.vmem [#allocation9], 48
        %v1383 = vld [vmem:[%s1382] sm:$0xf]
        %v1384 = vld [vmem:[%s1382 + $0x4] sm:$0xf]
        %v1385 = vld [vmem:[%s1382 + $0x8] sm:$0xf]
        %v1386 = vld [vmem:[%s1382 + $0xc] sm:$0xf]
        %v1391 = vunpack.c.l.b16 %v1383
        %v1392 = vunpack.c.l.b16 %v1384
        %v1393 = vunpack.c.l.b16 %v1385
        %v1394 = vunpack.c.l.b16 %v1386
        %v1395 = vpack.c.b16 %v1392, %v1391
        %v1396 = vpack.c.b16 %v1394, %v1393
        %1399 = vmatprep.subr.bf16.mxu0 0
        %1400 = vmatpush1.bf16.msra.mxu0 %v1395
        %1401 = vmatprep.subr.bf16.mxu0 0
        %1402 = vmatpush1.bf16.msra.mxu0 %v1396
        %1403 = vmatprep.subr.bf16.mxu0 0
        %1404 = vmatpush1.bf16.msra.mxu0 0
        %1405 = vmatprep.subr.bf16.mxu0 0
        %1406 = vmatpush1.bf16.msra.mxu0 0
        %1407 = vmatprep.subr.bf16.mxu0 0
        %1408 = vmatpush1.bf16.msra.mxu0 0
        %1409 = vmatprep.subr.bf16.mxu0 0
        %1410 = vmatpush1.bf16.msra.mxu0 0
        %1411 = vmatprep.subr.bf16.mxu0 0
        %1412 = vmatpush1.bf16.msra.mxu0 0
        %1413 = vmatprep.subr.bf16.mxu0 0
        %1414 = vmatpush1.bf16.msra.mxu0 0
        %1415 = vmatprep.subr.bf16.mxu0 0
        %1416 = vmatpush1.bf16.msra.mxu0 0
        %1417 = vmatprep.subr.bf16.mxu0 0
        %1418 = vmatpush1.bf16.msra.mxu0 0
        %1419 = vmatprep.subr.bf16.mxu0 0
        %1420 = vmatpush1.bf16.msra.mxu0 0
        %1421 = vmatprep.subr.bf16.mxu0 0
        %1422 = vmatpush1.bf16.msra.mxu0 0
        %1423 = vmatprep.subr.bf16.mxu0 0
        %1424 = vmatpush1.bf16.msra.mxu0 0
        %1425 = vmatprep.subr.bf16.mxu0 0
        %1426 = vmatpush1.bf16.msra.mxu0 0
        %1427 = vmatprep.subr.bf16.mxu0 0
        %1428 = vmatpush1.bf16.msra.mxu0 0
        %1429 = vmatprep.subr.bf16.mxu0 0
        %1430 = vmatpush1.bf16.msra.mxu0 0
        %1431 = vmatprep.mubr.bf16.mxu0 0
        %1432 = vmatmul.mubr.bf16.gmra.mrb[0].mxu0 %v521
        %v1433 = vpop.f32.mrb[0].mxu0
        %v1434 = vadd.f32 0.0, %v1433
        %v1435 = vpop.f32.mrb[0].mxu0
        %v1436 = vpop.f32.mrb[0].mxu0
        %v1437 = vpop.f32.mrb[0].mxu0
        %1438 = vdwg.mxu0
        %s1439 = scalar_lea.vmem [#allocation11], 48
        %v1440 = vld [vmem:[%s1439] sm:$0xf]
        %v1441 = vld [vmem:[%s1439 + $0x4] sm:$0xf]
        %v1442 = vld [vmem:[%s1439 + $0x8] sm:$0xf]
        %v1443 = vld [vmem:[%s1439 + $0xc] sm:$0xf]
        %v1448 = vunpack.c.l.b16 %v1440
        %v1449 = vunpack.c.l.b16 %v1441
        %v1450 = vunpack.c.l.b16 %v1442
        %v1451 = vunpack.c.l.b16 %v1443
        %v1452 = vpack.c.b16 %v1449, %v1448
        %v1453 = vpack.c.b16 %v1451, %v1450
        %1456 = vmatprep.subr.bf16.mxu0 0
        %1457 = vmatpush1.bf16.msra.mxu0 %v1452
        %1458 = vmatprep.subr.bf16.mxu0 0
        %1459 = vmatpush1.bf16.msra.mxu0 %v1453
        %1460 = vmatprep.subr.bf16.mxu0 0
        %1461 = vmatpush1.bf16.msra.mxu0 0
        %1462 = vmatprep.subr.bf16.mxu0 0
        %1463 = vmatpush1.bf16.msra.mxu0 0
        %1464 = vmatprep.subr.bf16.mxu0 0
        %1465 = vmatpush1.bf16.msra.mxu0 0
        %1466 = vmatprep.subr.bf16.mxu0 0
        %1467 = vmatpush1.bf16.msra.mxu0 0
        %1468 = vmatprep.subr.bf16.mxu0 0
        %1469 = vmatpush1.bf16.msra.mxu0 0
        %1470 = vmatprep.subr.bf16.mxu0 0
        %1471 = vmatpush1.bf16.msra.mxu0 0
        %1472 = vmatprep.subr.bf16.mxu0 0
        %1473 = vmatpush1.bf16.msra.mxu0 0
        %1474 = vmatprep.subr.bf16.mxu0 0
        %1475 = vmatpush1.bf16.msra.mxu0 0
        %1476 = vmatprep.subr.bf16.mxu0 0
        %1477 = vmatpush1.bf16.msra.mxu0 0
        %1478 = vmatprep.subr.bf16.mxu0 0
        %1479 = vmatpush1.bf16.msra.mxu0 0
        %1480 = vmatprep.subr.bf16.mxu0 0
        %1481 = vmatpush1.bf16.msra.mxu0 0
        %1482 = vmatprep.subr.bf16.mxu0 0
        %1483 = vmatpush1.bf16.msra.mxu0 0
        %1484 = vmatprep.subr.bf16.mxu0 0
        %1485 = vmatpush1.bf16.msra.mxu0 0
        %1486 = vmatprep.subr.bf16.mxu0 0
        %1487 = vmatpush1.bf16.msra.mxu0 0
        %1488 = vmatprep.mubr.bf16.mxu0 0
        %1489 = vmatmul.mubr.bf16.gmra.mrb[0].mxu0 %v521
        %v1490 = vpop.f32.mrb[0].mxu0
        %v1491 = vadd.f32 0.0, %v1490
        %v1492 = vpop.f32.mrb[0].mxu0
        %v1493 = vpop.f32.mrb[0].mxu0
        %v1494 = vpop.f32.mrb[0].mxu0
        %1495 = vdwg.mxu0
        %s1496 = scalar_lea.vmem [#allocation12], 48
        %v1497 = vld [vmem:[%s1496] sm:$0xf]
        %v1498 = vld [vmem:[%s1496 + $0x4] sm:$0xf]
        %v1499 = vld [vmem:[%s1496 + $0x8] sm:$0xf]
        %v1500 = vld [vmem:[%s1496 + $0xc] sm:$0xf]
        %v1505 = vunpack.c.l.b16 %v1497
        %v1506 = vunpack.c.l.b16 %v1498
        %v1507 = vunpack.c.l.b16 %v1499
        %v1508 = vunpack.c.l.b16 %v1500
        %v1509 = vpack.c.b16 %v1506, %v1505
        %v1510 = vpack.c.b16 %v1508, %v1507
        %1513 = vmatprep.subr.bf16.mxu0 0
        %1514 = vmatpush1.bf16.msra.mxu0 %v1509
        %1515 = vmatprep.subr.bf16.mxu0 0
        %1516 = vmatpush1.bf16.msra.mxu0 %v1510
        %1517 = vmatprep.subr.bf16.mxu0 0
        %1518 = vmatpush1.bf16.msra.mxu0 0
        %1519 = vmatprep.subr.bf16.mxu0 0
        %1520 = vmatpush1.bf16.msra.mxu0 0
        %1521 = vmatprep.subr.bf16.mxu0 0
        %1522 = vmatpush1.bf16.msra.mxu0 0
        %1523 = vmatprep.subr.bf16.mxu0 0
        %1524 = vmatpush1.bf16.msra.mxu0 0
        %1525 = vmatprep.subr.bf16.mxu0 0
        %1526 = vmatpush1.bf16.msra.mxu0 0
        %1527 = vmatprep.subr.bf16.mxu0 0
        %1528 = vmatpush1.bf16.msra.mxu0 0
        %1529 = vmatprep.subr.bf16.mxu0 0
        %1530 = vmatpush1.bf16.msra.mxu0 0
        %1531 = vmatprep.subr.bf16.mxu0 0
        %1532 = vmatpush1.bf16.msra.mxu0 0
        %1533 = vmatprep.subr.bf16.mxu0 0
        %1534 = vmatpush1.bf16.msra.mxu0 0
        %1535 = vmatprep.subr.bf16.mxu0 0
        %1536 = vmatpush1.bf16.msra.mxu0 0
        %1537 = vmatprep.subr.bf16.mxu0 0
        %1538 = vmatpush1.bf16.msra.mxu0 0
        %1539 = vmatprep.subr.bf16.mxu0 0
        %1540 = vmatpush1.bf16.msra.mxu0 0
        %1541 = vmatprep.subr.bf16.mxu0 0
        %1542 = vmatpush1.bf16.msra.mxu0 0
        %1543 = vmatprep.subr.bf16.mxu0 0
        %1544 = vmatpush1.bf16.msra.mxu0 0
        %1545 = vmatprep.mubr.bf16.mxu0 0
        %1546 = vmatmul.mubr.bf16.gmra.mrb[0].mxu0 %v521
        %v1547 = vpop.f32.mrb[0].mxu0
        %v1548 = vadd.f32 0.0, %v1547
        %v1549 = vpop.f32.mrb[0].mxu0
        %v1550 = vpop.f32.mrb[0].mxu0
        %v1551 = vpop.f32.mrb[0].mxu0
        %1552 = vdwg.mxu0
        %v1553 = vpack.c.bf16 %v1434, %v1434
        %v1554 = vpack.c.bf16 %v1491, %v1491
        %v1556 = vsel %vm677, %v1553, 0
        %v1559 = vsel %vm677, %v1554, 0
        %1561 = vmatprep.subr.bf16.mxu0 0
        %1562 = vmatpush1.bf16.xpose.msra.mxu0 %v1559
        %1563 = vmatprep.subr.bf16.mxu0 0
        %1564 = vmatpush1.bf16.xpose.msra.mxu0 0
        %1565 = vmatprep.subr.bf16.mxu0 0
        %1566 = vmatpush1.bf16.xpose.msra.mxu0 0
        %1567 = vmatprep.subr.bf16.mxu0 0
        %1568 = vmatpush1.bf16.xpose.msra.mxu0 0
        %1569 = vmatprep.subr.bf16.mxu0 0
        %1570 = vmatpush1.bf16.xpose.msra.mxu0 0
        %1571 = vmatprep.subr.bf16.mxu0 0
        %1572 = vmatpush1.bf16.xpose.msra.mxu0 0
        %1573 = vmatprep.subr.bf16.mxu0 0
        %1574 = vmatpush1.bf16.xpose.msra.mxu0 0
        %1575 = vmatprep.subr.bf16.mxu0 0
        %1576 = vmatpush1.bf16.xpose.msra.mxu0 0
        %1577 = vmatprep.subr.bf16.mxu0 0
        %1578 = vmatpush1.bf16.xpose.msra.mxu0 0
        %1579 = vmatprep.subr.bf16.mxu0 0
        %1580 = vmatpush1.bf16.xpose.msra.mxu0 0
        %1581 = vmatprep.subr.bf16.mxu0 0
        %1582 = vmatpush1.bf16.xpose.msra.mxu0 0
        %1583 = vmatprep.subr.bf16.mxu0 0
        %1584 = vmatpush1.bf16.xpose.msra.mxu0 0
        %1585 = vmatprep.subr.bf16.mxu0 0
        %1586 = vmatpush1.bf16.xpose.msra.mxu0 0
        %1587 = vmatprep.subr.bf16.mxu0 0
        %1588 = vmatpush1.bf16.xpose.msra.mxu0 0
        %1589 = vmatprep.subr.bf16.mxu0 0
        %1590 = vmatpush1.bf16.xpose.msra.mxu0 0
        %1591 = vmatprep.subr.bf16.mxu0 0
        %1592 = vmatpush1.bf16.xpose.msra.mxu0 0
        %1593 = vmatprep.mubr.bf16.mxu0 0
        %1594 = vmatmul.mubr.bf16.gmra.mrb[0].mxu0 %v1556
        %v1595 = vpop.f32.mrb[0].mxu0
        %v1596 = vadd.f32 0.0, %v1595
        %v1597 = vpop.f32.mrb[0].mxu0
        %v1598 = vpop.f32.mrb[0].mxu0
        %v1599 = vpop.f32.mrb[0].mxu0
        %1600 = vdwg.mxu0
        %v1601 = vmul.f32 %v1596, 0.35355338
        %s1602 = scalar_lea.vmem %s430, 12 [#allocation8]
        %v1603 = vld [vmem:[%s1602] sm:$0xf]
        %v1604 = vunpack.c.l.bf16 %v1603
        %v1605 = vadd.f32 %v1601, %v1604
        %v1606 = vsel %vm734, %v1605, -9e+15
        %v1607 = vsel %vm677, %v1606, -inf
        %1608 = vmax.xlane.f32.xlu0 %v1607
        %v1609 = vpop.xlane.xlu0 %1608
        %v1610 = vsub.f32 %v1606, %v1609
        %v1611 = vmul.f32 %v1610, 1.442695
        %v1612 = vpow.pop %v1611
        %v1613 = vsel %vm677, %v1612, 0.0
        %1614 = vadd.xlane.f32.xlu0 %v1613
        %v1615 = vpop.xlane.xlu0 %1614
        %v1616 = vrcp.pop %v1615
        %v1617 = vmul.f32 %v1612, %v1616
        %s1618 = scalar_lea.vmem %s491, 24 [#allocation17]
        %1619 = vst.msk [vmem:[%s1618] sm:$0xff] %vm677, %v1617
        %v1620 = vpack.c.bf16 %v1617, %v1617
        %v1621 = vpack.c.bf16 %v1548, %v1548
        %v1623 = vsel %vm677, %v1620, 0
        %v1626 = vsel %vm753, %v1621, 0
        %1628 = vmatprep.subr.bf16.mxu0 0
        %1629 = vmatpush1.bf16.msra.mxu0 %v1626
        %1630 = vmatprep.subr.bf16.mxu0 0
        %1631 = vmatpush1.bf16.msra.mxu0 0
        %1632 = vmatprep.subr.bf16.mxu0 0
        %1633 = vmatpush1.bf16.msra.mxu0 0
        %1634 = vmatprep.subr.bf16.mxu0 0
        %1635 = vmatpush1.bf16.msra.mxu0 0
        %1636 = vmatprep.subr.bf16.mxu0 0
        %1637 = vmatpush1.bf16.msra.mxu0 0
        %1638 = vmatprep.subr.bf16.mxu0 0
        %1639 = vmatpush1.bf16.msra.mxu0 0
        %1640 = vmatprep.subr.bf16.mxu0 0
        %1641 = vmatpush1.bf16.msra.mxu0 0
        %1642 = vmatprep.subr.bf16.mxu0 0
        %1643 = vmatpush1.bf16.msra.mxu0 0
        %1644 = vmatprep.subr.bf16.mxu0 0
        %1645 = vmatpush1.bf16.msra.mxu0 0
        %1646 = vmatprep.subr.bf16.mxu0 0
        %1647 = vmatpush1.bf16.msra.mxu0 0
        %1648 = vmatprep.subr.bf16.mxu0 0
        %1649 = vmatpush1.bf16.msra.mxu0 0
        %1650 = vmatprep.subr.bf16.mxu0 0
        %1651 = vmatpush1.bf16.msra.mxu0 0
        %1652 = vmatprep.subr.bf16.mxu0 0
        %1653 = vmatpush1.bf16.msra.mxu0 0
        %1654 = vmatprep.subr.bf16.mxu0 0
        %1655 = vmatpush1.bf16.msra.mxu0 0
        %1656 = vmatprep.subr.bf16.mxu0 0
        %1657 = vmatpush1.bf16.msra.mxu0 0
        %1658 = vmatprep.subr.bf16.mxu0 0
        %1659 = vmatpush1.bf16.msra.mxu0 0
        %1660 = vmatprep.mubr.bf16.mxu0 0
        %1661 = vmatmul.mubr.bf16.gmra.mrb[0].mxu0 %v1623
        %v1662 = vpop.f32.mrb[0].mxu0
        %v1663 = vadd.f32 0.0, %v1662
        %v1664 = vpop.f32.mrb[0].mxu0
        %v1665 = vpop.f32.mrb[0].mxu0
        %v1666 = vpop.f32.mrb[0].mxu0
        %1667 = vdwg.mxu0
        %1669 = vrot.lane.b32.xlu0 %v1663, 24
        %v1670 = vpop.permute.xlu0 %1669
        %vm1672 = vcmask 261312
        %1673 = vst.msk [vmem:[#allocation2] sm:$0xff] %vm1672, %v1670
        %v1674 = vld [vmem:[#allocation2] sm:$0xff]
        %v1675 = vadd.f32 %v500, %v1674
        %v1676 = vsel %vm519, %v1675, 0.0
        %1677 = vadd.xlane.f32.xlu0 %v1676
        %v1678 = vpop.xlane.xlu0 %1677
        %v1679 = vrcp.pop 32.0
        %v1680 = vmul.f32 %v1678, %v1679
        %v1681 = vsub.f32 %v1675, %v1680
        %v1682 = vmul.f32 %v1681, %v1681
        %v1683 = vsel %vm519, %v1682, 0.0
        %1684 = vadd.xlane.f32.xlu0 %v1683
        %v1685 = vpop.xlane.xlu0 %1684
        %v1686 = vmul.f32 %v1685, %v1679
        %v1687 = vadd.f32 %v1686, 1e-06
        %v1688 = vrsqrt.pop %v1687
        %v1689 = vmul.f32 %v1681, %v1688
        %v1690 = vld [vmem:[#allocation14] sm:$0x1]
        %v1692 = vlaneseq
        %v1693 = vshrl.u32 %v1692, 7
        %v1694 = vsub.s32 0, %v1693
        %v1695 = vrot.slane %v1690, %v1694
        %v1697 = vmul.f32 %v1689, %v1695
        %v1698 = vld [vmem:[#allocation15] sm:$0x1]
        %v1700 = vlaneseq
        %v1701 = vshrl.u32 %v1700, 7
        %v1702 = vsub.s32 0, %v1701
        %v1703 = vrot.slane %v1698, %v1702
        %v1705 = vadd.f32 %v1697, %v1703
        %1706 = vst.msk [vmem:[%s498] sm:$0xff] %vm519, %v1705
        %s1707 = sand.u32 %s227, 1
        %s1708 = scalar_lea.sflag [#allocation5], %s1707
        %s1709 = sand.u32 %s227, 1
        %s1710 = smul.addr %s1709, 32
        %s1711 = scalar_lea.vmem [#allocation17], %s1710
        %s1712 = sand.u32 %s253, 1
        %s1713 = scalar_lea.sflag [#allocation19], %s1712
        %s1714 = sand.u32 %s253, 1
        %s1715 = smul.addr %s1714, 8
        %s1716 = scalar_lea.vmem [#allocation18], %s1715
        // Predicated region
        $region85: #{tpu_custom_call.1} parent=51 // pred_check
          %p1717 = pneg %p237
        $region86: #{tpu_custom_call.1} parent=51 // pred_check_branch
          %1719 = sbr.rel (%p1717) target = $region88
        $region87: #{tpu_custom_call.1} parent=51 // pred_region
          %s1721 = ssub.s32 512, 512
          %1722 = vsyncadd %s1708, %s1721
          %s1723 = smul.addr %s36, 4
          %s1724 = smul.addr %s1723, 128
          %s1725 = scalar_lea.hbm %s8, %s1724
          %s1726 = sshll.u32 %s1711, 4
          %s1727 = int_to_ptr.vmem [resolvable:$true] %s1726
          %1732 = dma.vmem_to_hbm [thread:$0]  %s1727, 512, %s1725, %s1708, 128, 128, 8
        $region88: #{tpu_custom_call.1} parent=51 // pred_fallthru
          _
        // Predicated region
        $region89: #{tpu_custom_call.1} parent=51 // pred_check
          %p1733 = pneg %p263
        $region90: #{tpu_custom_call.1} parent=51 // pred_check_branch
          %1735 = sbr.rel (%p1733) target = $region92
        $region91: #{tpu_custom_call.1} parent=51 // pred_region
          %s1737 = ssub.s32 128, 128
          %1738 = vsyncadd %s1713, %s1737
          %s1739 = smul.addr %s36, 128
          %s1740 = scalar_lea.hbm %s9, %s1739
          %s1742 = sshll.u32 %s1716, 4
          %s1743 = int_to_ptr.vmem [resolvable:$true] %s1742
          %1745 = dma.vmem_to_hbm [thread:$0]  %s1743, 128, %s1740, %s1713
        $region92: #{tpu_custom_call.1} parent=51 // pred_fallthru
          _
      $region52: #{tpu_custom_call.1} parent=5 // pred_fallthru
        _
      %p1746 = scmp.le.s32.totalorder 2, %s31
      // Predicated region
      $region93: #{tpu_custom_call.1} parent=5 // pred_check
        %p1747 = pneg %p1746
      $region94: #{tpu_custom_call.1} parent=5 // pred_check_branch
        %1749 = sbr.rel (%p1747) target = $region96
      $region95: #{tpu_custom_call.1} parent=5 // pred_region
        %s1750 = ssub.s32 %s31, 2
        // Predicated region
        $region97: #{tpu_custom_call.1} parent=95 // pred_check
          %p1751 = pneg %p243
        $region98: #{tpu_custom_call.1} parent=95 // pred_check_branch
          %1753 = sbr.rel (%p1751) target = $region100
        $region99: #{tpu_custom_call.1} parent=95 // pred_region
          %s1754 = sand.u32 %s228, 1
          %s1755 = scalar_lea.sflag [#allocation5], %s1754
          %s1756 = sand.u32 %s228, 1
          %s1757 = smul.addr %s1756, 32
          %s1758 = scalar_lea.vmem [#allocation17], %s1757
          %1759 = dma.done %s1755, 512
        $region100: #{tpu_custom_call.1} parent=95 // pred_fallthru
          _
        // Predicated region
        $region101: #{tpu_custom_call.1} parent=95 // pred_check
          %p1760 = pneg %p269
        $region102: #{tpu_custom_call.1} parent=95 // pred_check_branch
          %1762 = sbr.rel (%p1760) target = $region104
        $region103: #{tpu_custom_call.1} parent=95 // pred_region
          %s1763 = sand.u32 %s254, 1
          %s1764 = scalar_lea.sflag [#allocation19], %s1763
          %s1765 = sand.u32 %s254, 1
          %s1766 = smul.addr %s1765, 8
          %s1767 = scalar_lea.vmem [#allocation18], %s1766
          %1768 = dma.done %s1764, 128
        $region104: #{tpu_custom_call.1} parent=95 // pred_fallthru
          _
      $region96: #{tpu_custom_call.1} parent=5 // pred_fallthru
        _
    $region6: #{tpu_custom_call.1} parent=1 // loop_footer
      %s35 = sadd.s32 1, %s31
    $region7: #{tpu_custom_call.1} parent=1 // loop_footer_branch
      %30 = sbr.rel target = $region3
    $region8: #{tpu_custom_call.1} parent=1 // loop_exit
      _
    %1769 = vsyncpa [#allocation4], 1
    %s1770 = scalar_lea.sflag [#allocation4], 1
    %1771 = vsyncpa %s1770, 1
    %1772 = vsyncpa [#allocation7], 1
    %s1773 = scalar_lea.sflag [#allocation7], 1
    %1774 = vsyncpa %s1773, 1
    %1775 = vsyncpa [#allocation10], 1
    %1776 = vsyncpa [#allocation13], 1
    %1777 = vsyncpa [#allocation16], 1
    %1778 = vsyncpa [#allocation5], 1
    %s1779 = scalar_lea.sflag [#allocation5], 1
    %1780 = vsyncpa %s1779, 1
    %1781 = vsyncpa [#allocation19], 1
    %s1782 = scalar_lea.sflag [#allocation19], 1
    %1783 = vsyncpa %s1782, 1

</llo_original>
